<compile_context>
chip_gen: v6e
topology: v6e:2x2x1
jax: 0.10.0
libtpu: 0.0.40
codegen_flags: <defaults>
</compile_context>

<pallas_src>
import functools

import numpy as np
import jax
import jax.numpy as jnp
from jax.experimental import pallas as pl
from jax.experimental.pallas import tpu as pltpu

LRELU_SLOPE = 0.2
BN_EPS = 0.8          # nn.BatchNorm2d(out_filters, 0.8) -> eps = 0.8
OUT_LANES = 128       # lane-dense output width


# ---------------------------------------------------------------- kernel ----
def _make_kernel(plan):
    """plan: tuple of (H, W, Cin, Ho, Wo, Cout) per conv block (static)."""
    n_blocks = len(plan)

    def kernel(*refs):
        x_ref = refs[0]
        blk_refs = refs[1:1 + 3 * n_blocks]
        hw_ref = refs[1 + 3 * n_blocks]     # head weight, (Hf, Wf*128) f32
        hb_ref = refs[2 + 3 * n_blocks]     # head bias, (1, 1) f32
        o_ref = refs[3 + 3 * n_blocks]      # (1, 1, 128) f32

        # Activation for this sample, layout (H, W*Cin), kept in VMEM/vregs.
        x = x_ref[0]
        for i, (H, W, Cin, Ho, Wo, Cout) in enumerate(plan):
            g_ref = blk_refs[3 * i]      # (3, Ho, H)        bf16 row-tap select
            m_ref = blk_refs[3 * i + 1]  # (3, W*Cin, Wo*Cout) bf16 fused weights
            t_ref = blk_refs[3 * i + 2]  # (2, 1, Wo*Cout)   f32 [bias*scale; shift]

            xb = x.astype(jnp.bfloat16)
            acc = jnp.zeros((Ho, Wo * Cout), jnp.float32)
            for ki in range(3):
                # Row-tap gather (with H zero-padding folded into G) as a matmul.
                r = jnp.dot(g_ref[ki], xb, preferred_element_type=jnp.float32)
                # Column taps + channel contraction + BN scale folded into M.
                acc = acc + jnp.dot(r.astype(jnp.bfloat16), m_ref[ki],
                                    preferred_element_type=jnp.float32)
            z = acc + t_ref[0]                              # + bias*scale
            a = jnp.where(z > 0, z, LRELU_SLOPE * z)        # LeakyReLU(0.2)
            # Dropout2d(0.25) -> identity in eval mode.
            x = a + t_ref[1]                                # + BN shift

        # Head: Linear(128*ds*ds, 1) + Softplus as VPU multiply + reduction.
        prod = x * hw_ref[...]
        s = jnp.sum(jnp.sum(prod, axis=1, keepdims=True), axis=0, keepdims=True)
        zh = s + hb_ref[...]                                # (1, 1)
        sp = jnp.maximum(zh, 0.0) + jnp.log(1.0 + jnp.exp(-jnp.abs(zh)))
        # Lane-dense store: broadcast the scalar across 128 lanes.
        o_ref[0] = jnp.zeros((1, OUT_LANES), jnp.float32) + sp

    return kernel


# -------------------------------------------------------------- forward -----
@functools.partial(jax.jit, static_argnames=("plan",))
def _forward_impl(img_nchw, blocks, hw2d, hb2d, plan):
    B, C, H0, W0 = img_nchw.shape
    Hf, Wf = hw2d.shape[0], hw2d.shape[1] // OUT_LANES

    # NCHW -> per-sample (H, W*C) layout (index w*C + c on lanes).
    x2d = jnp.transpose(img_nchw, (0, 2, 3, 1)).reshape(B, H0, W0 * C)
    x2d = x2d.astype(jnp.float32)

    in_specs = [pl.BlockSpec((1, H0, W0 * C), lambda b: (b, 0, 0))]
    args = [x2d]
    for (g, m, t), (H, W, Cin, Ho, Wo, Cout) in zip(blocks, plan):
        in_specs.append(pl.BlockSpec((3, Ho, H), lambda b: (0, 0, 0)))
        in_specs.append(pl.BlockSpec((3, W * Cin, Wo * Cout), lambda b: (0, 0, 0)))
        in_specs.append(pl.BlockSpec((2, 1, Wo * Cout), lambda b: (0, 0, 0)))
        args += [g, m, t]
    in_specs.append(pl.BlockSpec((Hf, Wf * OUT_LANES), lambda b: (0, 0)))
    in_specs.append(pl.BlockSpec((1, 1), lambda b: (0, 0)))
    args += [hw2d, hb2d]

    flops = 0
    for (H, W, Cin, Ho, Wo, Cout) in plan:
        flops += B * 3 * (2 * Ho * H * W * Cin + 2 * Ho * W * Cin * Wo * Cout)
    flops += B * 2 * Hf * Wf * OUT_LANES
    bytes_accessed = sum(int(np.prod(a.shape)) * a.dtype.itemsize for a in args)
    bytes_accessed += B * OUT_LANES * 4

    out = pl.pallas_call(
        _make_kernel(plan),
        out_shape=jax.ShapeDtypeStruct((B, 1, OUT_LANES), jnp.float32),
        grid=(B,),
        in_specs=in_specs,
        out_specs=pl.BlockSpec((1, 1, OUT_LANES), lambda b: (b, 0, 0)),
        compiler_params=pltpu.CompilerParams(
            dimension_semantics=("parallel",)),
        cost_estimate=pl.CostEstimate(flops=flops, transcendentals=2 * B,
                                      bytes_accessed=bytes_accessed),
    )(*args)
    return out[:, 0, :1]      # (B, 1), lane-dense store sliced outside


def discriminator1_forward(img_nchw, params):
    return _forward_impl(img_nchw, params["blocks"], params["hw"], params["hb"],
                         plan=params["plan"])


# --------------------------------------------------------------- params -----
def init_params(key, channels, img_size):
    assert img_size % 16 == 0, "img_size must be divisible by 2**4"
    specs = [(16, False), (32, True), (64, True), (128, True)]
    keys = jax.random.split(key, 2 * len(specs) + 2)

    plan, blocks, raw_blocks = [], [], []
    cin, H = channels, img_size
    for i, (cout, bn) in enumerate(specs):
        kw, kb = keys[2 * i], keys[2 * i + 1]
        W = H
        Ho, Wo = H // 2, W // 2
        w_oihw = jax.random.normal(kw, (cout, cin, 3, 3), jnp.float32) * 0.05
        bias = jax.random.normal(kb, (cout,), jnp.float32) * 0.05
        if bn:  # fresh-module BN: gamma=1, beta=0, running stats (0, 1), eps=0.8
            scale = np.ones((cout,), np.float32) / np.sqrt(1.0 + BN_EPS)
            shift = np.zeros((cout,), np.float32)
        else:
            scale = np.ones((cout,), np.float32)
            shift = np.zeros((cout,), np.float32)
        # BN-scale fold into weights/bias requires scale > 0 (gamma >= 0).
        assert np.all(scale > 0)

        w_np, b_np = np.asarray(w_oihw), np.asarray(bias)

        # Row-tap selection matrices (H-direction gather, pad=1 folded in).
        G = np.zeros((3, Ho, H), np.float32)
        for ki in range(3):
            for ho in range(Ho):
                h = 2 * ho + ki - 1
                if 0 <= h < H:
                    G[ki, ho, h] = 1.0

        # Fused weight matrices: column taps + channel contraction + BN scale.
        M = np.zeros((3, W * cin, Wo * cout), np.float32)
        for ki in range(3):
            for kj in range(3):
                wk = w_np[:, :, ki, kj].T * scale[None, :]   # (cin, cout), scaled
                for wo in range(Wo):
                    w = 2 * wo + kj - 1
                    if 0 <= w < W:
                        M[ki, w * cin:(w + 1) * cin,
                          wo * cout:(wo + 1) * cout] = wk

        tail = np.zeros((2, 1, Wo * cout), np.float32)
        tail[0, 0] = np.tile(b_np * scale, Wo)   # bias * scale
        tail[1, 0] = np.tile(shift, Wo)          # BN shift

        blocks.append((jnp.asarray(G, jnp.bfloat16),
                       jnp.asarray(M, jnp.bfloat16),
                       jnp.asarray(tail, jnp.float32)))
        raw_blocks.append((w_oihw, bias, jnp.asarray(scale), jnp.asarray(shift)))
        plan.append((H, W, cin, Ho, Wo, cout))
        cin, H = cout, Ho

    Hf = Wf = img_size // 16
    feat = 128 * Hf * Wf
    head_w = jax.random.normal(keys[-2], (1, feat), jnp.float32) * 0.05
    head_b = jax.random.normal(keys[-1], (1,), jnp.float32) * 0.05
    # Permute head weight into the kernel's (h, w*128 + c) activation layout.
    hw_np = np.asarray(head_w).reshape(128, Hf, Wf)
    hw2d = np.zeros((Hf, Wf * 128), np.float32)
    for h in range(Hf):
        for w in range(Wf):
            hw2d[h, w * 128:(w + 1) * 128] = hw_np[:, h, w]
    hb2d = np.asarray(head_b, np.float32).reshape(1, 1)

    kernel_params = {"blocks": tuple(blocks), "hw": jnp.asarray(hw2d),
                     "hb": jnp.asarray(hb2d), "plan": tuple(plan)}
    ref_params = {"blocks": raw_blocks, "head_w": head_w, "head_b": head_b}
    return kernel_params, ref_params


# ------------------------------------------------------- pure-JAX reference --
def reference_forward(img_nchw, ref_params):
    x = img_nchw.astype(jnp.float32)
    for (w_oihw, bias, scale, shift) in ref_params["blocks"]:
        x = jax.lax.conv_general_dilated(
            x, w_oihw, window_strides=(2, 2), padding=((1, 1), (1, 1)),
            dimension_numbers=("NCHW", "OIHW", "NCHW"))
        x = x + bias[None, :, None, None]
        x = jnp.where(x > 0, x, LRELU_SLOPE * x)
        x = x * scale[None, :, None, None] + shift[None, :, None, None]
    flat = x.reshape(x.shape[0], -1)                       # PyTorch NCHW flatten
    z = flat @ ref_params["head_w"].T + ref_params["head_b"][None, :]
    return jax.nn.softplus(z)


# ------------------------------------------------------------------ main -----
if __name__ == "__main__":
    CHANNELS = 4    # stands in for opt.channels
    IMG_SIZE = 16   # stands in for opt.img_size (ds_size = 16 // 2**4 = 1)
    BATCH = 2

    key = jax.random.PRNGKey(0)
    k_img, k_par = jax.random.split(key)
    img = jax.random.normal(k_img, (BATCH, CHANNELS, IMG_SIZE, IMG_SIZE),
                            jnp.float32)
    kparams, rparams = init_params(k_par, CHANNELS, IMG_SIZE)

    validity = discriminator1_forward(img, kparams)
    jax.block_until_ready(validity)

    assert validity.shape == (BATCH, 1)
    assert bool(jnp.all(jnp.isfinite(validity)))
    assert bool(jnp.all(validity >= 0.0))   # softplus output is non-negative

    ref = reference_forward(img, rparams)
    np.testing.assert_allclose(np.asarray(validity), np.asarray(ref),
                               rtol=2e-2, atol=2e-2)
    print("KERNEL_OK")
</pallas_src>

<mosaic_0001>
module attributes {stable_mosaic.version = 11 : i64} {
  func.func @kernel(%arg0: i32, %arg1: memref<1x16x64xf32, #tpu.memory_space<vmem>>, %arg2: memref<3x8x16xbf16, #tpu.memory_space<vmem>>, %arg3: memref<3x64x128xbf16, #tpu.memory_space<vmem>>, %arg4: memref<2x1x128xf32, #tpu.memory_space<vmem>>, %arg5: memref<3x4x8xbf16, #tpu.memory_space<vmem>>, %arg6: memref<3x128x128xbf16, #tpu.memory_space<vmem>>, %arg7: memref<2x1x128xf32, #tpu.memory_space<vmem>>, %arg8: memref<3x2x4xbf16, #tpu.memory_space<vmem>>, %arg9: memref<3x128x128xbf16, #tpu.memory_space<vmem>>, %arg10: memref<2x1x128xf32, #tpu.memory_space<vmem>>, %arg11: memref<3x1x2xbf16, #tpu.memory_space<vmem>>, %arg12: memref<3x128x128xbf16, #tpu.memory_space<vmem>>, %arg13: memref<2x1x128xf32, #tpu.memory_space<vmem>>, %arg14: memref<1x128xf32, #tpu.memory_space<vmem>>, %arg15: memref<1x1xf32, #tpu.memory_space<vmem>>, %arg16: memref<1x1x128xf32, #tpu.memory_space<vmem>>) attributes {dimension_semantics = [#tpu.dimension_semantics<parallel>], iteration_bounds = array<i64: 2>, scalar_prefetch = 0 : i64, scratch_operands = 0 : i64, tpu.core_type = #tpu.core_type<tc>, window_params = [{transform_indices = @transform_0, window_bounds = array<i64: 1, 16, 64>}, {pipeline_mode = #tpu.pipeline_mode<synchronous>, transform_indices = @transform_1, window_bounds = array<i64: 3, 8, 16>}, {pipeline_mode = #tpu.pipeline_mode<synchronous>, transform_indices = @transform_2, window_bounds = array<i64: 3, 64, 128>}, {pipeline_mode = #tpu.pipeline_mode<synchronous>, transform_indices = @transform_3, window_bounds = array<i64: 2, 1, 128>}, {pipeline_mode = #tpu.pipeline_mode<synchronous>, transform_indices = @transform_4, window_bounds = array<i64: 3, 4, 8>}, {pipeline_mode = #tpu.pipeline_mode<synchronous>, transform_indices = @transform_5, window_bounds = array<i64: 3, 128, 128>}, {pipeline_mode = #tpu.pipeline_mode<synchronous>, transform_indices = @transform_6, window_bounds = array<i64: 2, 1, 128>}, {pipeline_mode = #tpu.pipeline_mode<synchronous>, transform_indices = @transform_7, window_bounds = array<i64: 3, 2, 4>}, {pipeline_mode = #tpu.pipeline_mode<synchronous>, transform_indices = @transform_8, window_bounds = array<i64: 3, 128, 128>}, {pipeline_mode = #tpu.pipeline_mode<synchronous>, transform_indices = @transform_9, window_bounds = array<i64: 2, 1, 128>}, {pipeline_mode = #tpu.pipeline_mode<synchronous>, transform_indices = @transform_10, window_bounds = array<i64: 3, 1, 2>}, {pipeline_mode = #tpu.pipeline_mode<synchronous>, transform_indices = @transform_11, window_bounds = array<i64: 3, 128, 128>}, {pipeline_mode = #tpu.pipeline_mode<synchronous>, transform_indices = @transform_12, window_bounds = array<i64: 2, 1, 128>}, {pipeline_mode = #tpu.pipeline_mode<synchronous>, transform_indices = @transform_13, window_bounds = array<i64: 1, 128>}, {pipeline_mode = #tpu.pipeline_mode<synchronous>, transform_indices = @transform_14, window_bounds = array<i64: 1, 1>}, {transform_indices = @transform_15, window_bounds = array<i64: 1, 1, 128>}]} {
    %c0 = arith.constant 0 : index
    %c0_0 = arith.constant 0 : index
    %c0_1 = arith.constant 0 : index
    %0 = vector.load %arg1[%c0, %c0_0, %c0_1] : memref<1x16x64xf32, #tpu.memory_space<vmem>>, vector<1x16x64xf32>
    %1 = vector.shape_cast %0 : vector<1x16x64xf32> to vector<16x64xf32>
    %2 = arith.truncf %1 : vector<16x64xf32> to vector<16x64xbf16>
    %cst = arith.constant 0.000000e+00 : f32
    %3 = vector.broadcast %cst : f32 to vector<8x128xf32>
    %c0_2 = arith.constant 0 : index
    %c0_3 = arith.constant 0 : index
    %c0_4 = arith.constant 0 : index
    %4 = vector.load %arg2[%c0_2, %c0_3, %c0_4] : memref<3x8x16xbf16, #tpu.memory_space<vmem>>, vector<1x8x16xbf16>
    %5 = vector.shape_cast %4 : vector<1x8x16xbf16> to vector<8x16xbf16>
    %cst_5 = arith.constant dense<0.000000e+00> : vector<8x64xf32>
    %6 = tpu.matmul %5, %2, %cst_5 {dimension_numbers = #tpu.dot_dimension_numbers<[1], [0], [0], [1], [0, 0, 1, 1], [], []>} : vector<8x16xbf16>, vector<16x64xbf16>, vector<8x64xf32> -> vector<8x64xf32>
    %7 = arith.truncf %6 : vector<8x64xf32> to vector<8x64xbf16>
    %c0_6 = arith.constant 0 : index
    %c0_7 = arith.constant 0 : index
    %c0_8 = arith.constant 0 : index
    %8 = vector.load %arg3[%c0_6, %c0_7, %c0_8] : memref<3x64x128xbf16, #tpu.memory_space<vmem>>, vector<1x64x128xbf16>
    %9 = vector.shape_cast %8 : vector<1x64x128xbf16> to vector<64x128xbf16>
    %cst_9 = arith.constant dense<0.000000e+00> : vector<8x128xf32>
    %10 = tpu.matmul %7, %9, %cst_9 {dimension_numbers = #tpu.dot_dimension_numbers<[1], [0], [0], [1], [0, 0, 1, 1], [], []>} : vector<8x64xbf16>, vector<64x128xbf16>, vector<8x128xf32> -> vector<8x128xf32>
    %11 = arith.addf %3, %10 : vector<8x128xf32>
    %c1 = arith.constant 1 : index
    %c0_10 = arith.constant 0 : index
    %c0_11 = arith.constant 0 : index
    %12 = vector.load %arg2[%c1, %c0_10, %c0_11] : memref<3x8x16xbf16, #tpu.memory_space<vmem>>, vector<1x8x16xbf16>
    %13 = vector.shape_cast %12 : vector<1x8x16xbf16> to vector<8x16xbf16>
    %cst_12 = arith.constant dense<0.000000e+00> : vector<8x64xf32>
    %14 = tpu.matmul %13, %2, %cst_12 {dimension_numbers = #tpu.dot_dimension_numbers<[1], [0], [0], [1], [0, 0, 1, 1], [], []>} : vector<8x16xbf16>, vector<16x64xbf16>, vector<8x64xf32> -> vector<8x64xf32>
    %15 = arith.truncf %14 : vector<8x64xf32> to vector<8x64xbf16>
    %c1_13 = arith.constant 1 : index
    %c0_14 = arith.constant 0 : index
    %c0_15 = arith.constant 0 : index
    %16 = vector.load %arg3[%c1_13, %c0_14, %c0_15] : memref<3x64x128xbf16, #tpu.memory_space<vmem>>, vector<1x64x128xbf16>
    %17 = vector.shape_cast %16 : vector<1x64x128xbf16> to vector<64x128xbf16>
    %cst_16 = arith.constant dense<0.000000e+00> : vector<8x128xf32>
    %18 = tpu.matmul %15, %17, %cst_16 {dimension_numbers = #tpu.dot_dimension_numbers<[1], [0], [0], [1], [0, 0, 1, 1], [], []>} : vector<8x64xbf16>, vector<64x128xbf16>, vector<8x128xf32> -> vector<8x128xf32>
    %19 = arith.addf %11, %18 : vector<8x128xf32>
    %c2 = arith.constant 2 : index
    %c0_17 = arith.constant 0 : index
    %c0_18 = arith.constant 0 : index
    %20 = vector.load %arg2[%c2, %c0_17, %c0_18] : memref<3x8x16xbf16, #tpu.memory_space<vmem>>, vector<1x8x16xbf16>
    %21 = vector.shape_cast %20 : vector<1x8x16xbf16> to vector<8x16xbf16>
    %cst_19 = arith.constant dense<0.000000e+00> : vector<8x64xf32>
    %22 = tpu.matmul %21, %2, %cst_19 {dimension_numbers = #tpu.dot_dimension_numbers<[1], [0], [0], [1], [0, 0, 1, 1], [], []>} : vector<8x16xbf16>, vector<16x64xbf16>, vector<8x64xf32> -> vector<8x64xf32>
    %23 = arith.truncf %22 : vector<8x64xf32> to vector<8x64xbf16>
    %c2_20 = arith.constant 2 : index
    %c0_21 = arith.constant 0 : index
    %c0_22 = arith.constant 0 : index
    %24 = vector.load %arg3[%c2_20, %c0_21, %c0_22] : memref<3x64x128xbf16, #tpu.memory_space<vmem>>, vector<1x64x128xbf16>
    %25 = vector.shape_cast %24 : vector<1x64x128xbf16> to vector<64x128xbf16>
    %cst_23 = arith.constant dense<0.000000e+00> : vector<8x128xf32>
    %26 = tpu.matmul %23, %25, %cst_23 {dimension_numbers = #tpu.dot_dimension_numbers<[1], [0], [0], [1], [0, 0, 1, 1], [], []>} : vector<8x64xbf16>, vector<64x128xbf16>, vector<8x128xf32> -> vector<8x128xf32>
    %27 = arith.addf %19, %26 : vector<8x128xf32>
    %c0_24 = arith.constant 0 : index
    %c0_25 = arith.constant 0 : index
    %c0_26 = arith.constant 0 : index
    %28 = vector.load %arg4[%c0_24, %c0_25, %c0_26] : memref<2x1x128xf32, #tpu.memory_space<vmem>>, vector<1x1x128xf32>
    %29 = vector.shape_cast %28 : vector<1x1x128xf32> to vector<1x128xf32>
    %30 = vector.broadcast %29 : vector<1x128xf32> to vector<8x128xf32>
    %31 = arith.addf %27, %30 : vector<8x128xf32>
    %cst_27 = arith.constant 0.000000e+00 : f32
    %32 = vector.broadcast %cst_27 : f32 to vector<8x128xf32>
    %33 = arith.cmpf ogt, %31, %32 : vector<8x128xf32>
    %cst_28 = arith.constant 2.000000e-01 : f32
    %34 = vector.broadcast %cst_28 : f32 to vector<8x128xf32>
    %35 = arith.mulf %34, %31 : vector<8x128xf32>
    %36 = arith.select %33, %31, %35 : vector<8x128xi1>, vector<8x128xf32>
    %c1_29 = arith.constant 1 : index
    %c0_30 = arith.constant 0 : index
    %c0_31 = arith.constant 0 : index
    %37 = vector.load %arg4[%c1_29, %c0_30, %c0_31] : memref<2x1x128xf32, #tpu.memory_space<vmem>>, vector<1x1x128xf32>
    %38 = vector.shape_cast %37 : vector<1x1x128xf32> to vector<1x128xf32>
    %39 = vector.broadcast %38 : vector<1x128xf32> to vector<8x128xf32>
    %40 = arith.addf %36, %39 : vector<8x128xf32>
    %41 = arith.truncf %40 : vector<8x128xf32> to vector<8x128xbf16>
    %cst_32 = arith.constant 0.000000e+00 : f32
    %42 = vector.broadcast %cst_32 : f32 to vector<4x128xf32>
    %c0_33 = arith.constant 0 : index
    %c0_34 = arith.constant 0 : index
    %c0_35 = arith.constant 0 : index
    %43 = vector.load %arg5[%c0_33, %c0_34, %c0_35] : memref<3x4x8xbf16, #tpu.memory_space<vmem>>, vector<1x4x8xbf16>
    %44 = vector.shape_cast %43 : vector<1x4x8xbf16> to vector<4x8xbf16>
    %cst_36 = arith.constant dense<0.000000e+00> : vector<4x128xf32>
    %45 = tpu.matmul %44, %41, %cst_36 {dimension_numbers = #tpu.dot_dimension_numbers<[1], [0], [0], [1], [0, 0, 1, 1], [], []>} : vector<4x8xbf16>, vector<8x128xbf16>, vector<4x128xf32> -> vector<4x128xf32>
    %46 = arith.truncf %45 : vector<4x128xf32> to vector<4x128xbf16>
    %c0_37 = arith.constant 0 : index
    %c0_38 = arith.constant 0 : index
    %c0_39 = arith.constant 0 : index
    %47 = vector.load %arg6[%c0_37, %c0_38, %c0_39] : memref<3x128x128xbf16, #tpu.memory_space<vmem>>, vector<1x128x128xbf16>
    %48 = vector.shape_cast %47 : vector<1x128x128xbf16> to vector<128x128xbf16>
    %cst_40 = arith.constant dense<0.000000e+00> : vector<4x128xf32>
    %49 = tpu.matmul %46, %48, %cst_40 {dimension_numbers = #tpu.dot_dimension_numbers<[1], [0], [0], [1], [0, 0, 1, 1], [], []>} : vector<4x128xbf16>, vector<128x128xbf16>, vector<4x128xf32> -> vector<4x128xf32>
    %50 = arith.addf %42, %49 : vector<4x128xf32>
    %c1_41 = arith.constant 1 : index
    %c0_42 = arith.constant 0 : index
    %c0_43 = arith.constant 0 : index
    %51 = vector.load %arg5[%c1_41, %c0_42, %c0_43] : memref<3x4x8xbf16, #tpu.memory_space<vmem>>, vector<1x4x8xbf16>
    %52 = vector.shape_cast %51 : vector<1x4x8xbf16> to vector<4x8xbf16>
    %cst_44 = arith.constant dense<0.000000e+00> : vector<4x128xf32>
    %53 = tpu.matmul %52, %41, %cst_44 {dimension_numbers = #tpu.dot_dimension_numbers<[1], [0], [0], [1], [0, 0, 1, 1], [], []>} : vector<4x8xbf16>, vector<8x128xbf16>, vector<4x128xf32> -> vector<4x128xf32>
    %54 = arith.truncf %53 : vector<4x128xf32> to vector<4x128xbf16>
    %c1_45 = arith.constant 1 : index
    %c0_46 = arith.constant 0 : index
    %c0_47 = arith.constant 0 : index
    %55 = vector.load %arg6[%c1_45, %c0_46, %c0_47] : memref<3x128x128xbf16, #tpu.memory_space<vmem>>, vector<1x128x128xbf16>
    %56 = vector.shape_cast %55 : vector<1x128x128xbf16> to vector<128x128xbf16>
    %cst_48 = arith.constant dense<0.000000e+00> : vector<4x128xf32>
    %57 = tpu.matmul %54, %56, %cst_48 {dimension_numbers = #tpu.dot_dimension_numbers<[1], [0], [0], [1], [0, 0, 1, 1], [], []>} : vector<4x128xbf16>, vector<128x128xbf16>, vector<4x128xf32> -> vector<4x128xf32>
    %58 = arith.addf %50, %57 : vector<4x128xf32>
    %c2_49 = arith.constant 2 : index
    %c0_50 = arith.constant 0 : index
    %c0_51 = arith.constant 0 : index
    %59 = vector.load %arg5[%c2_49, %c0_50, %c0_51] : memref<3x4x8xbf16, #tpu.memory_space<vmem>>, vector<1x4x8xbf16>
    %60 = vector.shape_cast %59 : vector<1x4x8xbf16> to vector<4x8xbf16>
    %cst_52 = arith.constant dense<0.000000e+00> : vector<4x128xf32>
    %61 = tpu.matmul %60, %41, %cst_52 {dimension_numbers = #tpu.dot_dimension_numbers<[1], [0], [0], [1], [0, 0, 1, 1], [], []>} : vector<4x8xbf16>, vector<8x128xbf16>, vector<4x128xf32> -> vector<4x128xf32>
    %62 = arith.truncf %61 : vector<4x128xf32> to vector<4x128xbf16>
    %c2_53 = arith.constant 2 : index
    %c0_54 = arith.constant 0 : index
    %c0_55 = arith.constant 0 : index
    %63 = vector.load %arg6[%c2_53, %c0_54, %c0_55] : memref<3x128x128xbf16, #tpu.memory_space<vmem>>, vector<1x128x128xbf16>
    %64 = vector.shape_cast %63 : vector<1x128x128xbf16> to vector<128x128xbf16>
    %cst_56 = arith.constant dense<0.000000e+00> : vector<4x128xf32>
    %65 = tpu.matmul %62, %64, %cst_56 {dimension_numbers = #tpu.dot_dimension_numbers<[1], [0], [0], [1], [0, 0, 1, 1], [], []>} : vector<4x128xbf16>, vector<128x128xbf16>, vector<4x128xf32> -> vector<4x128xf32>
    %66 = arith.addf %58, %65 : vector<4x128xf32>
    %c0_57 = arith.constant 0 : index
    %c0_58 = arith.constant 0 : index
    %c0_59 = arith.constant 0 : index
    %67 = vector.load %arg7[%c0_57, %c0_58, %c0_59] : memref<2x1x128xf32, #tpu.memory_space<vmem>>, vector<1x1x128xf32>
    %68 = vector.shape_cast %67 : vector<1x1x128xf32> to vector<1x128xf32>
    %69 = vector.broadcast %68 : vector<1x128xf32> to vector<4x128xf32>
    %70 = arith.addf %66, %69 : vector<4x128xf32>
    %cst_60 = arith.constant 0.000000e+00 : f32
    %71 = vector.broadcast %cst_60 : f32 to vector<4x128xf32>
    %72 = arith.cmpf ogt, %70, %71 : vector<4x128xf32>
    %cst_61 = arith.constant 2.000000e-01 : f32
    %73 = vector.broadcast %cst_61 : f32 to vector<4x128xf32>
    %74 = arith.mulf %73, %70 : vector<4x128xf32>
    %75 = arith.select %72, %70, %74 : vector<4x128xi1>, vector<4x128xf32>
    %c1_62 = arith.constant 1 : index
    %c0_63 = arith.constant 0 : index
    %c0_64 = arith.constant 0 : index
    %76 = vector.load %arg7[%c1_62, %c0_63, %c0_64] : memref<2x1x128xf32, #tpu.memory_space<vmem>>, vector<1x1x128xf32>
    %77 = vector.shape_cast %76 : vector<1x1x128xf32> to vector<1x128xf32>
    %78 = vector.broadcast %77 : vector<1x128xf32> to vector<4x128xf32>
    %79 = arith.addf %75, %78 : vector<4x128xf32>
    %80 = arith.truncf %79 : vector<4x128xf32> to vector<4x128xbf16>
    %cst_65 = arith.constant 0.000000e+00 : f32
    %81 = vector.broadcast %cst_65 : f32 to vector<2x128xf32>
    %c0_66 = arith.constant 0 : index
    %c0_67 = arith.constant 0 : index
    %c0_68 = arith.constant 0 : index
    %82 = vector.load %arg8[%c0_66, %c0_67, %c0_68] : memref<3x2x4xbf16, #tpu.memory_space<vmem>>, vector<1x2x4xbf16>
    %83 = vector.shape_cast %82 : vector<1x2x4xbf16> to vector<2x4xbf16>
    %cst_69 = arith.constant dense<0.000000e+00> : vector<2x128xf32>
    %84 = tpu.matmul %83, %80, %cst_69 {dimension_numbers = #tpu.dot_dimension_numbers<[1], [0], [0], [1], [0, 0, 1, 1], [], []>} : vector<2x4xbf16>, vector<4x128xbf16>, vector<2x128xf32> -> vector<2x128xf32>
    %85 = arith.truncf %84 : vector<2x128xf32> to vector<2x128xbf16>
    %c0_70 = arith.constant 0 : index
    %c0_71 = arith.constant 0 : index
    %c0_72 = arith.constant 0 : index
    %86 = vector.load %arg9[%c0_70, %c0_71, %c0_72] : memref<3x128x128xbf16, #tpu.memory_space<vmem>>, vector<1x128x128xbf16>
    %87 = vector.shape_cast %86 : vector<1x128x128xbf16> to vector<128x128xbf16>
    %cst_73 = arith.constant dense<0.000000e+00> : vector<2x128xf32>
    %88 = tpu.matmul %85, %87, %cst_73 {dimension_numbers = #tpu.dot_dimension_numbers<[1], [0], [0], [1], [0, 0, 1, 1], [], []>} : vector<2x128xbf16>, vector<128x128xbf16>, vector<2x128xf32> -> vector<2x128xf32>
    %89 = arith.addf %81, %88 : vector<2x128xf32>
    %c1_74 = arith.constant 1 : index
    %c0_75 = arith.constant 0 : index
    %c0_76 = arith.constant 0 : index
    %90 = vector.load %arg8[%c1_74, %c0_75, %c0_76] : memref<3x2x4xbf16, #tpu.memory_space<vmem>>, vector<1x2x4xbf16>
    %91 = vector.shape_cast %90 : vector<1x2x4xbf16> to vector<2x4xbf16>
    %cst_77 = arith.constant dense<0.000000e+00> : vector<2x128xf32>
    %92 = tpu.matmul %91, %80, %cst_77 {dimension_numbers = #tpu.dot_dimension_numbers<[1], [0], [0], [1], [0, 0, 1, 1], [], []>} : vector<2x4xbf16>, vector<4x128xbf16>, vector<2x128xf32> -> vector<2x128xf32>
    %93 = arith.truncf %92 : vector<2x128xf32> to vector<2x128xbf16>
    %c1_78 = arith.constant 1 : index
    %c0_79 = arith.constant 0 : index
    %c0_80 = arith.constant 0 : index
    %94 = vector.load %arg9[%c1_78, %c0_79, %c0_80] : memref<3x128x128xbf16, #tpu.memory_space<vmem>>, vector<1x128x128xbf16>
    %95 = vector.shape_cast %94 : vector<1x128x128xbf16> to vector<128x128xbf16>
    %cst_81 = arith.constant dense<0.000000e+00> : vector<2x128xf32>
    %96 = tpu.matmul %93, %95, %cst_81 {dimension_numbers = #tpu.dot_dimension_numbers<[1], [0], [0], [1], [0, 0, 1, 1], [], []>} : vector<2x128xbf16>, vector<128x128xbf16>, vector<2x128xf32> -> vector<2x128xf32>
    %97 = arith.addf %89, %96 : vector<2x128xf32>
    %c2_82 = arith.constant 2 : index
    %c0_83 = arith.constant 0 : index
    %c0_84 = arith.constant 0 : index
    %98 = vector.load %arg8[%c2_82, %c0_83, %c0_84] : memref<3x2x4xbf16, #tpu.memory_space<vmem>>, vector<1x2x4xbf16>
    %99 = vector.shape_cast %98 : vector<1x2x4xbf16> to vector<2x4xbf16>
    %cst_85 = arith.constant dense<0.000000e+00> : vector<2x128xf32>
    %100 = tpu.matmul %99, %80, %cst_85 {dimension_numbers = #tpu.dot_dimension_numbers<[1], [0], [0], [1], [0, 0, 1, 1], [], []>} : vector<2x4xbf16>, vector<4x128xbf16>, vector<2x128xf32> -> vector<2x128xf32>
    %101 = arith.truncf %100 : vector<2x128xf32> to vector<2x128xbf16>
    %c2_86 = arith.constant 2 : index
    %c0_87 = arith.constant 0 : index
    %c0_88 = arith.constant 0 : index
    %102 = vector.load %arg9[%c2_86, %c0_87, %c0_88] : memref<3x128x128xbf16, #tpu.memory_space<vmem>>, vector<1x128x128xbf16>
    %103 = vector.shape_cast %102 : vector<1x128x128xbf16> to vector<128x128xbf16>
    %cst_89 = arith.constant dense<0.000000e+00> : vector<2x128xf32>
    %104 = tpu.matmul %101, %103, %cst_89 {dimension_numbers = #tpu.dot_dimension_numbers<[1], [0], [0], [1], [0, 0, 1, 1], [], []>} : vector<2x128xbf16>, vector<128x128xbf16>, vector<2x128xf32> -> vector<2x128xf32>
    %105 = arith.addf %97, %104 : vector<2x128xf32>
    %c0_90 = arith.constant 0 : index
    %c0_91 = arith.constant 0 : index
    %c0_92 = arith.constant 0 : index
    %106 = vector.load %arg10[%c0_90, %c0_91, %c0_92] : memref<2x1x128xf32, #tpu.memory_space<vmem>>, vector<1x1x128xf32>
    %107 = vector.shape_cast %106 : vector<1x1x128xf32> to vector<1x128xf32>
    %108 = vector.broadcast %107 : vector<1x128xf32> to vector<2x128xf32>
    %109 = arith.addf %105, %108 : vector<2x128xf32>
    %cst_93 = arith.constant 0.000000e+00 : f32
    %110 = vector.broadcast %cst_93 : f32 to vector<2x128xf32>
    %111 = arith.cmpf ogt, %109, %110 : vector<2x128xf32>
    %cst_94 = arith.constant 2.000000e-01 : f32
    %112 = vector.broadcast %cst_94 : f32 to vector<2x128xf32>
    %113 = arith.mulf %112, %109 : vector<2x128xf32>
    %114 = arith.select %111, %109, %113 : vector<2x128xi1>, vector<2x128xf32>
    %c1_95 = arith.constant 1 : index
    %c0_96 = arith.constant 0 : index
    %c0_97 = arith.constant 0 : index
    %115 = vector.load %arg10[%c1_95, %c0_96, %c0_97] : memref<2x1x128xf32, #tpu.memory_space<vmem>>, vector<1x1x128xf32>
    %116 = vector.shape_cast %115 : vector<1x1x128xf32> to vector<1x128xf32>
    %117 = vector.broadcast %116 : vector<1x128xf32> to vector<2x128xf32>
    %118 = arith.addf %114, %117 : vector<2x128xf32>
    %119 = arith.truncf %118 : vector<2x128xf32> to vector<2x128xbf16>
    %cst_98 = arith.constant 0.000000e+00 : f32
    %120 = vector.broadcast %cst_98 : f32 to vector<1x128xf32>
    %c0_99 = arith.constant 0 : index
    %c0_100 = arith.constant 0 : index
    %c0_101 = arith.constant 0 : index
    %121 = vector.load %arg11[%c0_99, %c0_100, %c0_101] : memref<3x1x2xbf16, #tpu.memory_space<vmem>>, vector<1x1x2xbf16>
    %122 = vector.shape_cast %121 : vector<1x1x2xbf16> to vector<1x2xbf16>
    %cst_102 = arith.constant dense<0.000000e+00> : vector<1x128xf32>
    %123 = tpu.matmul %122, %119, %cst_102 {dimension_numbers = #tpu.dot_dimension_numbers<[1], [0], [0], [1], [0, 0, 1, 1], [], []>} : vector<1x2xbf16>, vector<2x128xbf16>, vector<1x128xf32> -> vector<1x128xf32>
    %124 = arith.truncf %123 : vector<1x128xf32> to vector<1x128xbf16>
    %c0_103 = arith.constant 0 : index
    %c0_104 = arith.constant 0 : index
    %c0_105 = arith.constant 0 : index
    %125 = vector.load %arg12[%c0_103, %c0_104, %c0_105] : memref<3x128x128xbf16, #tpu.memory_space<vmem>>, vector<1x128x128xbf16>
    %126 = vector.shape_cast %125 : vector<1x128x128xbf16> to vector<128x128xbf16>
    %cst_106 = arith.constant dense<0.000000e+00> : vector<1x128xf32>
    %127 = tpu.matmul %124, %126, %cst_106 {dimension_numbers = #tpu.dot_dimension_numbers<[1], [0], [0], [1], [0, 0, 1, 1], [], []>} : vector<1x128xbf16>, vector<128x128xbf16>, vector<1x128xf32> -> vector<1x128xf32>
    %128 = arith.addf %120, %127 : vector<1x128xf32>
    %c1_107 = arith.constant 1 : index
    %c0_108 = arith.constant 0 : index
    %c0_109 = arith.constant 0 : index
    %129 = vector.load %arg11[%c1_107, %c0_108, %c0_109] : memref<3x1x2xbf16, #tpu.memory_space<vmem>>, vector<1x1x2xbf16>
    %130 = vector.shape_cast %129 : vector<1x1x2xbf16> to vector<1x2xbf16>
    %cst_110 = arith.constant dense<0.000000e+00> : vector<1x128xf32>
    %131 = tpu.matmul %130, %119, %cst_110 {dimension_numbers = #tpu.dot_dimension_numbers<[1], [0], [0], [1], [0, 0, 1, 1], [], []>} : vector<1x2xbf16>, vector<2x128xbf16>, vector<1x128xf32> -> vector<1x128xf32>
    %132 = arith.truncf %131 : vector<1x128xf32> to vector<1x128xbf16>
    %c1_111 = arith.constant 1 : index
    %c0_112 = arith.constant 0 : index
    %c0_113 = arith.constant 0 : index
    %133 = vector.load %arg12[%c1_111, %c0_112, %c0_113] : memref<3x128x128xbf16, #tpu.memory_space<vmem>>, vector<1x128x128xbf16>
    %134 = vector.shape_cast %133 : vector<1x128x128xbf16> to vector<128x128xbf16>
    %cst_114 = arith.constant dense<0.000000e+00> : vector<1x128xf32>
    %135 = tpu.matmul %132, %134, %cst_114 {dimension_numbers = #tpu.dot_dimension_numbers<[1], [0], [0], [1], [0, 0, 1, 1], [], []>} : vector<1x128xbf16>, vector<128x128xbf16>, vector<1x128xf32> -> vector<1x128xf32>
    %136 = arith.addf %128, %135 : vector<1x128xf32>
    %c2_115 = arith.constant 2 : index
    %c0_116 = arith.constant 0 : index
    %c0_117 = arith.constant 0 : index
    %137 = vector.load %arg11[%c2_115, %c0_116, %c0_117] : memref<3x1x2xbf16, #tpu.memory_space<vmem>>, vector<1x1x2xbf16>
    %138 = vector.shape_cast %137 : vector<1x1x2xbf16> to vector<1x2xbf16>
    %cst_118 = arith.constant dense<0.000000e+00> : vector<1x128xf32>
    %139 = tpu.matmul %138, %119, %cst_118 {dimension_numbers = #tpu.dot_dimension_numbers<[1], [0], [0], [1], [0, 0, 1, 1], [], []>} : vector<1x2xbf16>, vector<2x128xbf16>, vector<1x128xf32> -> vector<1x128xf32>
    %140 = arith.truncf %139 : vector<1x128xf32> to vector<1x128xbf16>
    %c2_119 = arith.constant 2 : index
    %c0_120 = arith.constant 0 : index
    %c0_121 = arith.constant 0 : index
    %141 = vector.load %arg12[%c2_119, %c0_120, %c0_121] : memref<3x128x128xbf16, #tpu.memory_space<vmem>>, vector<1x128x128xbf16>
    %142 = vector.shape_cast %141 : vector<1x128x128xbf16> to vector<128x128xbf16>
    %cst_122 = arith.constant dense<0.000000e+00> : vector<1x128xf32>
    %143 = tpu.matmul %140, %142, %cst_122 {dimension_numbers = #tpu.dot_dimension_numbers<[1], [0], [0], [1], [0, 0, 1, 1], [], []>} : vector<1x128xbf16>, vector<128x128xbf16>, vector<1x128xf32> -> vector<1x128xf32>
    %144 = arith.addf %136, %143 : vector<1x128xf32>
    %c0_123 = arith.constant 0 : index
    %c0_124 = arith.constant 0 : index
    %c0_125 = arith.constant 0 : index
    %145 = vector.load %arg13[%c0_123, %c0_124, %c0_125] : memref<2x1x128xf32, #tpu.memory_space<vmem>>, vector<1x1x128xf32>
    %146 = vector.shape_cast %145 : vector<1x1x128xf32> to vector<1x128xf32>
    %147 = arith.addf %144, %146 : vector<1x128xf32>
    %cst_126 = arith.constant 0.000000e+00 : f32
    %148 = vector.broadcast %cst_126 : f32 to vector<1x128xf32>
    %149 = arith.cmpf ogt, %147, %148 : vector<1x128xf32>
    %cst_127 = arith.constant 2.000000e-01 : f32
    %150 = vector.broadcast %cst_127 : f32 to vector<1x128xf32>
    %151 = arith.mulf %150, %147 : vector<1x128xf32>
    %152 = arith.select %149, %147, %151 : vector<1x128xi1>, vector<1x128xf32>
    %c1_128 = arith.constant 1 : index
    %c0_129 = arith.constant 0 : index
    %c0_130 = arith.constant 0 : index
    %153 = vector.load %arg13[%c1_128, %c0_129, %c0_130] : memref<2x1x128xf32, #tpu.memory_space<vmem>>, vector<1x1x128xf32>
    %154 = vector.shape_cast %153 : vector<1x1x128xf32> to vector<1x128xf32>
    %155 = arith.addf %152, %154 : vector<1x128xf32>
    %c0_131 = arith.constant 0 : index
    %c0_132 = arith.constant 0 : index
    %156 = vector.load %arg14[%c0_131, %c0_132] : memref<1x128xf32, #tpu.memory_space<vmem>>, vector<1x128xf32>
    %157 = arith.mulf %155, %156 : vector<1x128xf32>
    %cst_133 = arith.constant dense<0.000000e+00> : vector<1xf32>
    %158 = vector.multi_reduction <add>, %157, %cst_133 [1] : vector<1x128xf32> to vector<1xf32>
    %159 = vector.shape_cast %158 : vector<1xf32> to vector<1x1xf32>
    %cst_134 = arith.constant dense<0.000000e+00> : vector<1xf32>
    %160 = vector.multi_reduction <add>, %159, %cst_134 [0] : vector<1x1xf32> to vector<1xf32>
    %161 = vector.shape_cast %160 : vector<1xf32> to vector<1x1xf32>
    %c0_135 = arith.constant 0 : index
    %c0_136 = arith.constant 0 : index
    %162 = vector.load %arg15[%c0_135, %c0_136] : memref<1x1xf32, #tpu.memory_space<vmem>>, vector<1x1xf32>
    %163 = arith.addf %161, %162 : vector<1x1xf32>
    %cst_137 = arith.constant 0.000000e+00 : f32
    %164 = vector.broadcast %cst_137 : f32 to vector<1x1xf32>
    %165 = arith.maximumf %163, %164 : vector<1x1xf32>
    %166 = math.absf %163 : vector<1x1xf32>
    %cst_138 = arith.constant 0.000000e+00 : f32
    %167 = vector.broadcast %cst_138 : f32 to vector<1x1xf32>
    %168 = arith.subf %167, %166 : vector<1x1xf32>
    %169 = math.exp %168 : vector<1x1xf32>
    %cst_139 = arith.constant 1.000000e+00 : f32
    %170 = vector.broadcast %cst_139 : f32 to vector<1x1xf32>
    %171 = arith.addf %170, %169 : vector<1x1xf32>
    %172 = math.log %171 : vector<1x1xf32>
    %173 = arith.addf %165, %172 : vector<1x1xf32>
    %cst_140 = arith.constant 0.000000e+00 : f32
    %174 = vector.broadcast %cst_140 : f32 to vector<1x128xf32>
    %175 = vector.broadcast %173 : vector<1x1xf32> to vector<1x128xf32>
    %176 = arith.addf %174, %175 : vector<1x128xf32>
    %c0_141 = arith.constant 0 : index
    %c0_142 = arith.constant 0 : index
    %c0_143 = arith.constant 0 : index
    %177 = vector.load %arg16[%c0_141, %c0_142, %c0_143] : memref<1x1x128xf32, #tpu.memory_space<vmem>>, vector<1x1x128xf32>
    %178 = vector.shape_cast %177 : vector<1x1x128xf32> to vector<1x128xf32>
    %179 = vector.shape_cast %176 : vector<1x128xf32> to vector<1x1x128xf32>
    tpu.vector_store %arg16[%c0_141, %c0_142, %c0_143], %179 {strides = array<i32>} : memref<1x1x128xf32, #tpu.memory_space<vmem>>, vector<1x1x128xf32>,
    return
  }
  func.func @transform_0(%arg0: i32) -> (i32, i32, i32) {
    %c0_i32 = arith.constant 0 : i32
    %c0_i32_0 = arith.constant 0 : i32
    %c0_i32_1 = arith.constant 0 : i32
    return %arg0, %c0_i32, %c0_i32_0 : i32, i32, i32
  }
  func.func @transform_1(%arg0: i32) -> (i32, i32, i32) {
    %c0_i32 = arith.constant 0 : i32
    %c0_i32_0 = arith.constant 0 : i32
    %c0_i32_1 = arith.constant 0 : i32
    %c0_i32_2 = arith.constant 0 : i32
    return %c0_i32, %c0_i32_0, %c0_i32_1 : i32, i32, i32
  }
  func.func @transform_2(%arg0: i32) -> (i32, i32, i32) {
    %c0_i32 = arith.constant 0 : i32
    %c0_i32_0 = arith.constant 0 : i32
    %c0_i32_1 = arith.constant 0 : i32
    %c0_i32_2 = arith.constant 0 : i32
    return %c0_i32, %c0_i32_0, %c0_i32_1 : i32, i32, i32
  }
  func.func @transform_3(%arg0: i32) -> (i32, i32, i32) {
    %c0_i32 = arith.constant 0 : i32
    %c0_i32_0 = arith.constant 0 : i32
    %c0_i32_1 = arith.constant 0 : i32
    %c0_i32_2 = arith.constant 0 : i32
    return %c0_i32, %c0_i32_0, %c0_i32_1 : i32, i32, i32
  }
  func.func @transform_4(%arg0: i32) -> (i32, i32, i32) {
    %c0_i32 = arith.constant 0 : i32
    %c0_i32_0 = arith.constant 0 : i32
    %c0_i32_1 = arith.constant 0 : i32
    %c0_i32_2 = arith.constant 0 : i32
    return %c0_i32, %c0_i32_0, %c0_i32_1 : i32, i32, i32
  }
  func.func @transform_5(%arg0: i32) -> (i32, i32, i32) {
    %c0_i32 = arith.constant 0 : i32
    %c0_i32_0 = arith.constant 0 : i32
    %c0_i32_1 = arith.constant 0 : i32
    %c0_i32_2 = arith.constant 0 : i32
    return %c0_i32, %c0_i32_0, %c0_i32_1 : i32, i32, i32
  }
  func.func @transform_6(%arg0: i32) -> (i32, i32, i32) {
    %c0_i32 = arith.constant 0 : i32
    %c0_i32_0 = arith.constant 0 : i32
    %c0_i32_1 = arith.constant 0 : i32
    %c0_i32_2 = arith.constant 0 : i32
    return %c0_i32, %c0_i32_0, %c0_i32_1 : i32, i32, i32
  }
  func.func @transform_7(%arg0: i32) -> (i32, i32, i32) {
    %c0_i32 = arith.constant 0 : i32
    %c0_i32_0 = arith.constant 0 : i32
    %c0_i32_1 = arith.constant 0 : i32
    %c0_i32_2 = arith.constant 0 : i32
    return %c0_i32, %c0_i32_0, %c0_i32_1 : i32, i32, i32
  }
  func.func @transform_8(%arg0: i32) -> (i32, i32, i32) {
    %c0_i32 = arith.constant 0 : i32
    %c0_i32_0 = arith.constant 0 : i32
    %c0_i32_1 = arith.constant 0 : i32
    %c0_i32_2 = arith.constant 0 : i32
    return %c0_i32, %c0_i32_0, %c0_i32_1 : i32, i32, i32
  }
  func.func @transform_9(%arg0: i32) -> (i32, i32, i32) {
    %c0_i32 = arith.constant 0 : i32
    %c0_i32_0 = arith.constant 0 : i32
    %c0_i32_1 = arith.constant 0 : i32
    %c0_i32_2 = arith.constant 0 : i32
    return %c0_i32, %c0_i32_0, %c0_i32_1 : i32, i32, i32
  }
  func.func @transform_10(%arg0: i32) -> (i32, i32, i32) {
    %c0_i32 = arith.constant 0 : i32
    %c0_i32_0 = arith.constant 0 : i32
    %c0_i32_1 = arith.constant 0 : i32
    %c0_i32_2 = arith.constant 0 : i32
    return %c0_i32, %c0_i32_0, %c0_i32_1 : i32, i32, i32
  }
  func.func @transform_11(%arg0: i32) -> (i32, i32, i32) {
    %c0_i32 = arith.constant 0 : i32
    %c0_i32_0 = arith.constant 0 : i32
    %c0_i32_1 = arith.constant 0 : i32
    %c0_i32_2 = arith.constant 0 : i32
    return %c0_i32, %c0_i32_0, %c0_i32_1 : i32, i32, i32
  }
  func.func @transform_12(%arg0: i32) -> (i32, i32, i32) {
    %c0_i32 = arith.constant 0 : i32
    %c0_i32_0 = arith.constant 0 : i32
    %c0_i32_1 = arith.constant 0 : i32
    %c0_i32_2 = arith.constant 0 : i32
    return %c0_i32, %c0_i32_0, %c0_i32_1 : i32, i32, i32
  }
  func.func @transform_13(%arg0: i32) -> (i32, i32) {
    %c0_i32 = arith.constant 0 : i32
    %c0_i32_0 = arith.constant 0 : i32
    %c0_i32_1 = arith.constant 0 : i32
    return %c0_i32, %c0_i32_0 : i32, i32
  }
  func.func @transform_14(%arg0: i32) -> (i32, i32) {
    %c0_i32 = arith.constant 0 : i32
    %c0_i32_0 = arith.constant 0 : i32
    %c0_i32_1 = arith.constant 0 : i32
    return %c0_i32, %c0_i32_0 : i32, i32
  }
  func.func @transform_15(%arg0: i32) -> (i32, i32, i32) {
    %c0_i32 = arith.constant 0 : i32
    %c0_i32_0 = arith.constant 0 : i32
    %c0_i32_1 = arith.constant 0 : i32
    return %arg0, %c0_i32, %c0_i32_0 : i32, i32, i32
  }
}

</mosaic_0001>

<llo_original>
// kernel: _forward_impl.1
$region0: #{_forward_impl.1}
  #allocation0 [shape = 'u32[]', space=smem, size = 0x4, offset = 0x4, fixed_abs, tag = 'smem constant byte address 0x4 - core index']
  #allocation1 [shape = 'u32[144,128]{1,0:T(1,128)}', space=vmem, size = 0x12000, scoped, tag = 'internal scratch']
  #allocation2 [shape = 'f32[1,1]{1,0:T(1,128)S(1)}', space=vmem, size = 0x200, scoped, tag = 'scoped memory for _forward_impl.1']
  %s0 = inlined_call_operand.vmem [shape: f32[2,16,64], index: 0, kind: input, shape index: {}]
  %s1 = inlined_call_operand.vmem [shape: bf16[3,8,16], index: 1, kind: input, shape index: {}]
  %s2 = inlined_call_operand.hbm [shape: bf16[3,64,128], index: 2, kind: input, shape index: {}]
  %s3 = inlined_call_operand.vmem [shape: f32[2,1,128], index: 3, kind: input, shape index: {}]
  %s4 = inlined_call_operand.vmem [shape: bf16[3,4,8], index: 4, kind: input, shape index: {}]
  %s5 = inlined_call_operand.vmem [shape: bf16[3,128,128], index: 5, kind: input, shape index: {}]
  %s6 = inlined_call_operand.vmem [shape: f32[2,1,128], index: 6, kind: input, shape index: {}]
  %s7 = inlined_call_operand.vmem [shape: bf16[3,2,4], index: 7, kind: input, shape index: {}]
  %s8 = inlined_call_operand.vmem [shape: bf16[3,128,128], index: 8, kind: input, shape index: {}]
  %s9 = inlined_call_operand.vmem [shape: f32[2,1,128], index: 9, kind: input, shape index: {}]
  %s10 = inlined_call_operand.vmem [shape: bf16[3,1,2], index: 10, kind: input, shape index: {}]
  %s11 = inlined_call_operand.hbm [shape: bf16[3,128,128], index: 11, kind: input, shape index: {}]
  %s12 = inlined_call_operand.vmem [shape: f32[2,1,128], index: 12, kind: input, shape index: {}]
  %s13 = inlined_call_operand.vmem [shape: f32[1,128], index: 13, kind: input, shape index: {}]
  %s14 = inlined_call_operand.<no memory space> [shape: f32[1,1], index: 14, kind: input, shape index: {}]
  %s15 = inlined_call_operand.vmem [shape: f32[2,1,128], index: 15, kind: output, shape index: {}]
  %s16 = sld [smem:[#allocation0]]
  $region101: #{_forward_impl.1} parent=0
    _
  %s18 = ssub.s32 1, %s16
  %s19 = scalar_select 0, %s18, %s16
  %v20 = vstv %s14
  %21 = vst [vmem:[#allocation2] sm:$0x1] %v20
  $region1: #{_forward_impl.1} parent=0
    #allocation3 [shape = 'u8[49152]{0}', space=vmem, size = 0xc000, scoped, tag = 'input window, operand 2, single buffered']
    #allocation4 [shape = 's32[2]{0}', space=sflag, size = 0x8, scoped, tag = 'scoped memory for _forward_impl.1']
    #allocation5 [shape = 'u8[98304]{0}', space=vmem, size = 0x18000, scoped, tag = 'input window, operand 11, single buffered']
    #allocation6 [shape = 's32[1]{0}', space=sflag, size = 0x4, scoped, tag = 'scoped memory for _forward_impl.1']
    %22 = vsyncpa [#allocation4], 0
    %23 = vsyncpa [#allocation6], 0
    loop: start=0, step=1, limit=4
    $region2: #{_forward_impl.1} parent=1 // loop_pre_header
      _
    $region3: #{_forward_impl.1} parent=1 // loop_header
      %s25 = sphi 0, %s29
      %p26 = scmp.ge.s32.totalorder %s25, 4
      %s35 = sphi 0, %s37
      %s38 = sphi 0, %s35
      %s39 = sphi 0, %s38
      %s55 = sphi 0, %s39
      %s59 = sphi 0, %s59
      %s61 = sphi 0, %s59
      %s62 = sphi 0, %s61
      %s76 = sphi 0, %s62
      %s80 = sphi 0, %s80
      %s82 = sphi 0, %s80
      %s83 = sphi 0, %s82
      %s97 = sphi 0, %s83
      %s101 = sphi 0, %s101
      %s103 = sphi 0, %s101
      %s104 = sphi 0, %s103
      %s118 = sphi 0, %s104
      %s122 = sphi 0, %s122
      %s124 = sphi 0, %s122
      %s125 = sphi 0, %s124
      %s139 = sphi 0, %s125
      %s143 = sphi 0, %s143
      %s145 = sphi 0, %s143
      %s146 = sphi 0, %s145
      %s160 = sphi 0, %s146
      %s164 = sphi 0, %s164
      %s166 = sphi 0, %s164
      %s167 = sphi 0, %s166
      %s181 = sphi 0, %s167
      %s185 = sphi 0, %s185
      %s187 = sphi 0, %s185
      %s188 = sphi 0, %s187
      %s202 = sphi 0, %s188
      %s206 = sphi 0, %s206
      %s208 = sphi 0, %s206
      %s209 = sphi 0, %s208
      %s223 = sphi 0, %s209
      %s227 = sphi 0, %s227
      %s229 = sphi 0, %s227
      %s230 = sphi 0, %s229
      %s244 = sphi 0, %s230
      %s248 = sphi 0, %s248
      %s250 = sphi 0, %s248
      %s251 = sphi 0, %s250
      %s265 = sphi 0, %s251
      %s269 = sphi 0, %s269
      %s271 = sphi 0, %s269
      %s272 = sphi 0, %s271
      %s286 = sphi 0, %s272
      %s290 = sphi 0, %s290
      %s292 = sphi 0, %s290
      %s293 = sphi 0, %s292
      %s307 = sphi 0, %s293
      %s311 = sphi 0, %s311
      %s313 = sphi 0, %s311
      %s314 = sphi 0, %s313
      %s328 = sphi 0, %s314
      %s332 = sphi 0, %s332
      %s334 = sphi 0, %s332
      %s335 = sphi 0, %s334
      %s349 = sphi 0, %s335
      %s355 = sphi 0, %s357
      %s358 = sphi 0, %s355
      %s359 = sphi 0, %s358
      %s375 = sphi 0, %s359
    $region4: #{_forward_impl.1} parent=1 // loop_header_branch
      %28 = sbr.rel (%p26) target = $region8
    $region5: #{_forward_impl.1} parent=1 // loop_body
      %s30 = ssub.s32 %s25, 1
      %s31 = ssub.s32 %s25, 2
      %s32 = sadd.s32 %s25, 1
      %s33 = ssub.s32 %s25, %s32
      %p34 = scmp.eq.s32.totalorder %s33, 0
      %s36 = sadd.s32 %s35, 1
      %s37 = scalar_select %p34, %s35, %s36
      %p40 = pneg %p34
      %p41 = scmp.eq.s32.totalorder %s25, 1
      %p42 = por %p40, %p41
      %p43 = scmp.ne.s32.totalorder %s35, %s38
      %p44 = scmp.eq.s32.totalorder %s25, 0
      %p45 = por %p43, %p44
      %p46 = scmp.ne.s32.totalorder %s35, %s38
      %p47 = scmp.eq.s32.totalorder %s30, 1
      %p48 = por %p46, %p47
      %p49 = scmp.ne.s32.totalorder %s38, %s39
      %p50 = scmp.eq.s32.totalorder %s30, 0
      %p51 = por %p49, %p50
      %p52 = scmp.ne.s32.totalorder %s38, %s39
      %p53 = scmp.eq.s32.totalorder %s31, 1
      %p54 = por %p52, %p53
      %p56 = scmp.ne.s32.totalorder %s39, %s55
      %p57 = scmp.eq.s32.totalorder %s31, 0
      %p58 = por %p56, %p57
      %s60 = sadd.s32 %s59, 1
      %p63 = scmp.eq.s32.totalorder %s25, 1
      %p64 = scmp.ne.s32.totalorder %s59, %s61
      %p65 = scmp.eq.s32.totalorder %s25, 0
      %p66 = por %p64, %p65
      %p67 = scmp.ne.s32.totalorder %s59, %s61
      %p68 = scmp.eq.s32.totalorder %s30, 1
      %p69 = por %p67, %p68
      %p70 = scmp.ne.s32.totalorder %s61, %s62
      %p71 = scmp.eq.s32.totalorder %s30, 0
      %p72 = por %p70, %p71
      %p73 = scmp.ne.s32.totalorder %s61, %s62
      %p74 = scmp.eq.s32.totalorder %s31, 1
      %p75 = por %p73, %p74
      %p77 = scmp.ne.s32.totalorder %s62, %s76
      %p78 = scmp.eq.s32.totalorder %s31, 0
      %p79 = por %p77, %p78
      %s81 = sadd.s32 %s80, 1
      %p84 = scmp.eq.s32.totalorder %s25, 1
      %p85 = scmp.ne.s32.totalorder %s80, %s82
      %p86 = scmp.eq.s32.totalorder %s25, 0
      %p87 = por %p85, %p86
      %p88 = scmp.ne.s32.totalorder %s80, %s82
      %p89 = scmp.eq.s32.totalorder %s30, 1
      %p90 = por %p88, %p89
      %p91 = scmp.ne.s32.totalorder %s82, %s83
      %p92 = scmp.eq.s32.totalorder %s30, 0
      %p93 = por %p91, %p92
      %p94 = scmp.ne.s32.totalorder %s82, %s83
      %p95 = scmp.eq.s32.totalorder %s31, 1
      %p96 = por %p94, %p95
      %p98 = scmp.ne.s32.totalorder %s83, %s97
      %p99 = scmp.eq.s32.totalorder %s31, 0
      %p100 = por %p98, %p99
      %s102 = sadd.s32 %s101, 1
      %p105 = scmp.eq.s32.totalorder %s25, 1
      %p106 = scmp.ne.s32.totalorder %s101, %s103
      %p107 = scmp.eq.s32.totalorder %s25, 0
      %p108 = por %p106, %p107
      %p109 = scmp.ne.s32.totalorder %s101, %s103
      %p110 = scmp.eq.s32.totalorder %s30, 1
      %p111 = por %p109, %p110
      %p112 = scmp.ne.s32.totalorder %s103, %s104
      %p113 = scmp.eq.s32.totalorder %s30, 0
      %p114 = por %p112, %p113
      %p115 = scmp.ne.s32.totalorder %s103, %s104
      %p116 = scmp.eq.s32.totalorder %s31, 1
      %p117 = por %p115, %p116
      %p119 = scmp.ne.s32.totalorder %s104, %s118
      %p120 = scmp.eq.s32.totalorder %s31, 0
      %p121 = por %p119, %p120
      %s123 = sadd.s32 %s122, 1
      %p126 = scmp.eq.s32.totalorder %s25, 1
      %p127 = scmp.ne.s32.totalorder %s122, %s124
      %p128 = scmp.eq.s32.totalorder %s25, 0
      %p129 = por %p127, %p128
      %p130 = scmp.ne.s32.totalorder %s122, %s124
      %p131 = scmp.eq.s32.totalorder %s30, 1
      %p132 = por %p130, %p131
      %p133 = scmp.ne.s32.totalorder %s124, %s125
      %p134 = scmp.eq.s32.totalorder %s30, 0
      %p135 = por %p133, %p134
      %p136 = scmp.ne.s32.totalorder %s124, %s125
      %p137 = scmp.eq.s32.totalorder %s31, 1
      %p138 = por %p136, %p137
      %p140 = scmp.ne.s32.totalorder %s125, %s139
      %p141 = scmp.eq.s32.totalorder %s31, 0
      %p142 = por %p140, %p141
      %s144 = sadd.s32 %s143, 1
      %p147 = scmp.eq.s32.totalorder %s25, 1
      %p148 = scmp.ne.s32.totalorder %s143, %s145
      %p149 = scmp.eq.s32.totalorder %s25, 0
      %p150 = por %p148, %p149
      %p151 = scmp.ne.s32.totalorder %s143, %s145
      %p152 = scmp.eq.s32.totalorder %s30, 1
      %p153 = por %p151, %p152
      %p154 = scmp.ne.s32.totalorder %s145, %s146
      %p155 = scmp.eq.s32.totalorder %s30, 0
      %p156 = por %p154, %p155
      %p157 = scmp.ne.s32.totalorder %s145, %s146
      %p158 = scmp.eq.s32.totalorder %s31, 1
      %p159 = por %p157, %p158
      %p161 = scmp.ne.s32.totalorder %s146, %s160
      %p162 = scmp.eq.s32.totalorder %s31, 0
      %p163 = por %p161, %p162
      %s165 = sadd.s32 %s164, 1
      %p168 = scmp.eq.s32.totalorder %s25, 1
      %p169 = scmp.ne.s32.totalorder %s164, %s166
      %p170 = scmp.eq.s32.totalorder %s25, 0
      %p171 = por %p169, %p170
      %p172 = scmp.ne.s32.totalorder %s164, %s166
      %p173 = scmp.eq.s32.totalorder %s30, 1
      %p174 = por %p172, %p173
      %p175 = scmp.ne.s32.totalorder %s166, %s167
      %p176 = scmp.eq.s32.totalorder %s30, 0
      %p177 = por %p175, %p176
      %p178 = scmp.ne.s32.totalorder %s166, %s167
      %p179 = scmp.eq.s32.totalorder %s31, 1
      %p180 = por %p178, %p179
      %p182 = scmp.ne.s32.totalorder %s167, %s181
      %p183 = scmp.eq.s32.totalorder %s31, 0
      %p184 = por %p182, %p183
      %s186 = sadd.s32 %s185, 1
      %p189 = scmp.eq.s32.totalorder %s25, 1
      %p190 = scmp.ne.s32.totalorder %s185, %s187
      %p191 = scmp.eq.s32.totalorder %s25, 0
      %p192 = por %p190, %p191
      %p193 = scmp.ne.s32.totalorder %s185, %s187
      %p194 = scmp.eq.s32.totalorder %s30, 1
      %p195 = por %p193, %p194
      %p196 = scmp.ne.s32.totalorder %s187, %s188
      %p197 = scmp.eq.s32.totalorder %s30, 0
      %p198 = por %p196, %p197
      %p199 = scmp.ne.s32.totalorder %s187, %s188
      %p200 = scmp.eq.s32.totalorder %s31, 1
      %p201 = por %p199, %p200
      %p203 = scmp.ne.s32.totalorder %s188, %s202
      %p204 = scmp.eq.s32.totalorder %s31, 0
      %p205 = por %p203, %p204
      %s207 = sadd.s32 %s206, 1
      %p210 = scmp.eq.s32.totalorder %s25, 1
      %p211 = scmp.ne.s32.totalorder %s206, %s208
      %p212 = scmp.eq.s32.totalorder %s25, 0
      %p213 = por %p211, %p212
      %p214 = scmp.ne.s32.totalorder %s206, %s208
      %p215 = scmp.eq.s32.totalorder %s30, 1
      %p216 = por %p214, %p215
      %p217 = scmp.ne.s32.totalorder %s208, %s209
      %p218 = scmp.eq.s32.totalorder %s30, 0
      %p219 = por %p217, %p218
      %p220 = scmp.ne.s32.totalorder %s208, %s209
      %p221 = scmp.eq.s32.totalorder %s31, 1
      %p222 = por %p220, %p221
      %p224 = scmp.ne.s32.totalorder %s209, %s223
      %p225 = scmp.eq.s32.totalorder %s31, 0
      %p226 = por %p224, %p225
      %s228 = sadd.s32 %s227, 1
      %p231 = scmp.eq.s32.totalorder %s25, 1
      %p232 = scmp.ne.s32.totalorder %s227, %s229
      %p233 = scmp.eq.s32.totalorder %s25, 0
      %p234 = por %p232, %p233
      %p235 = scmp.ne.s32.totalorder %s227, %s229
      %p236 = scmp.eq.s32.totalorder %s30, 1
      %p237 = por %p235, %p236
      %p238 = scmp.ne.s32.totalorder %s229, %s230
      %p239 = scmp.eq.s32.totalorder %s30, 0
      %p240 = por %p238, %p239
      %p241 = scmp.ne.s32.totalorder %s229, %s230
      %p242 = scmp.eq.s32.totalorder %s31, 1
      %p243 = por %p241, %p242
      %p245 = scmp.ne.s32.totalorder %s230, %s244
      %p246 = scmp.eq.s32.totalorder %s31, 0
      %p247 = por %p245, %p246
      %s249 = sadd.s32 %s248, 1
      %p252 = scmp.eq.s32.totalorder %s25, 1
      %p253 = scmp.ne.s32.totalorder %s248, %s250
      %p254 = scmp.eq.s32.totalorder %s25, 0
      %p255 = por %p253, %p254
      %p256 = scmp.ne.s32.totalorder %s248, %s250
      %p257 = scmp.eq.s32.totalorder %s30, 1
      %p258 = por %p256, %p257
      %p259 = scmp.ne.s32.totalorder %s250, %s251
      %p260 = scmp.eq.s32.totalorder %s30, 0
      %p261 = por %p259, %p260
      %p262 = scmp.ne.s32.totalorder %s250, %s251
      %p263 = scmp.eq.s32.totalorder %s31, 1
      %p264 = por %p262, %p263
      %p266 = scmp.ne.s32.totalorder %s251, %s265
      %p267 = scmp.eq.s32.totalorder %s31, 0
      %p268 = por %p266, %p267
      %s270 = sadd.s32 %s269, 1
      %p273 = scmp.eq.s32.totalorder %s25, 1
      %p274 = scmp.ne.s32.totalorder %s269, %s271
      %p275 = scmp.eq.s32.totalorder %s25, 0
      %p276 = por %p274, %p275
      %p277 = scmp.ne.s32.totalorder %s269, %s271
      %p278 = scmp.eq.s32.totalorder %s30, 1
      %p279 = por %p277, %p278
      %p280 = scmp.ne.s32.totalorder %s271, %s272
      %p281 = scmp.eq.s32.totalorder %s30, 0
      %p282 = por %p280, %p281
      %p283 = scmp.ne.s32.totalorder %s271, %s272
      %p284 = scmp.eq.s32.totalorder %s31, 1
      %p285 = por %p283, %p284
      %p287 = scmp.ne.s32.totalorder %s272, %s286
      %p288 = scmp.eq.s32.totalorder %s31, 0
      %p289 = por %p287, %p288
      %s291 = sadd.s32 %s290, 1
      %p294 = scmp.eq.s32.totalorder %s25, 1
      %p295 = scmp.ne.s32.totalorder %s290, %s292
      %p296 = scmp.eq.s32.totalorder %s25, 0
      %p297 = por %p295, %p296
      %p298 = scmp.ne.s32.totalorder %s290, %s292
      %p299 = scmp.eq.s32.totalorder %s30, 1
      %p300 = por %p298, %p299
      %p301 = scmp.ne.s32.totalorder %s292, %s293
      %p302 = scmp.eq.s32.totalorder %s30, 0
      %p303 = por %p301, %p302
      %p304 = scmp.ne.s32.totalorder %s292, %s293
      %p305 = scmp.eq.s32.totalorder %s31, 1
      %p306 = por %p304, %p305
      %p308 = scmp.ne.s32.totalorder %s293, %s307
      %p309 = scmp.eq.s32.totalorder %s31, 0
      %p310 = por %p308, %p309
      %s312 = sadd.s32 %s311, 1
      %p315 = scmp.eq.s32.totalorder %s25, 1
      %p316 = scmp.ne.s32.totalorder %s311, %s313
      %p317 = scmp.eq.s32.totalorder %s25, 0
      %p318 = por %p316, %p317
      %p319 = scmp.ne.s32.totalorder %s311, %s313
      %p320 = scmp.eq.s32.totalorder %s30, 1
      %p321 = por %p319, %p320
      %p322 = scmp.ne.s32.totalorder %s313, %s314
      %p323 = scmp.eq.s32.totalorder %s30, 0
      %p324 = por %p322, %p323
      %p325 = scmp.ne.s32.totalorder %s313, %s314
      %p326 = scmp.eq.s32.totalorder %s31, 1
      %p327 = por %p325, %p326
      %p329 = scmp.ne.s32.totalorder %s314, %s328
      %p330 = scmp.eq.s32.totalorder %s31, 0
      %p331 = por %p329, %p330
      %s333 = sadd.s32 %s332, 1
      %p336 = scmp.eq.s32.totalorder %s25, 1
      %p337 = scmp.ne.s32.totalorder %s332, %s334
      %p338 = scmp.eq.s32.totalorder %s25, 0
      %p339 = por %p337, %p338
      %p340 = scmp.ne.s32.totalorder %s332, %s334
      %p341 = scmp.eq.s32.totalorder %s30, 1
      %p342 = por %p340, %p341
      %p343 = scmp.ne.s32.totalorder %s334, %s335
      %p344 = scmp.eq.s32.totalorder %s30, 0
      %p345 = por %p343, %p344
      %p346 = scmp.ne.s32.totalorder %s334, %s335
      %p347 = scmp.eq.s32.totalorder %s31, 1
      %p348 = por %p346, %p347
      %p350 = scmp.ne.s32.totalorder %s335, %s349
      %p351 = scmp.eq.s32.totalorder %s31, 0
      %p352 = por %p350, %p351
      %s353 = ssub.s32 %s25, %s32
      %p354 = scmp.eq.s32.totalorder %s353, 0
      %s356 = sadd.s32 %s355, 1
      %s357 = scalar_select %p354, %s355, %s356
      %p360 = pneg %p354
      %p361 = scmp.eq.s32.totalorder %s25, 1
      %p362 = por %p360, %p361
      %p363 = scmp.ne.s32.totalorder %s355, %s358
      %p364 = scmp.eq.s32.totalorder %s25, 0
      %p365 = por %p363, %p364
      %p366 = scmp.ne.s32.totalorder %s355, %s358
      %p367 = scmp.eq.s32.totalorder %s30, 1
      %p368 = por %p366, %p367
      %p369 = scmp.ne.s32.totalorder %s358, %s359
      %p370 = scmp.eq.s32.totalorder %s30, 0
      %p371 = por %p369, %p370
      %p372 = scmp.ne.s32.totalorder %s358, %s359
      %p373 = scmp.eq.s32.totalorder %s31, 1
      %p374 = por %p372, %p373
      %p376 = scmp.ne.s32.totalorder %s359, %s375
      %p377 = scmp.eq.s32.totalorder %s31, 0
      %p378 = por %p376, %p377
      %p379 = scmp.le.s32.totalorder 1, %s25
      %p380 = scmp.lt.s32.totalorder %s25, 3
      %p381 = pnand %p379, %p380
      %p382 = pneg %p381
      // Predicated region
      $region9: #{_forward_impl.1} parent=5 // pred_check
        _
      $region10: #{_forward_impl.1} parent=5 // pred_check_branch
        %384 = sbr.rel (%p381) target = $region12
      $region11: #{_forward_impl.1} parent=5 // pred_region
        %s385 = ssub.s32 %s25, 1
        // Predicated region
        $region13: #{_forward_impl.1} parent=11 // pred_check
          %p386 = pneg %p72
        $region14: #{_forward_impl.1} parent=11 // pred_check_branch
          %388 = sbr.rel (%p386) target = $region16
        $region15: #{_forward_impl.1} parent=11 // pred_region
          _
        $region16: #{_forward_impl.1} parent=11 // pred_fallthru
          _
        // Predicated region
        $region17: #{_forward_impl.1} parent=11 // pred_check
          %p389 = pneg %p93
        $region18: #{_forward_impl.1} parent=11 // pred_check_branch
          %391 = sbr.rel (%p389) target = $region20
        $region19: #{_forward_impl.1} parent=11 // pred_region
          %s393 = ssub.s32 1536, 1536
          %394 = vsyncadd [#allocation4], %s393
          %s395 = sshll.u32 [#allocation3], 4
          %s396 = int_to_ptr.vmem [resolvable:$true] %s395
          %401 = dma.hbm_to_vmem [thread:$0]  %s2, 1536, %s396, [#allocation4], 64, 64, 4
        $region20: #{_forward_impl.1} parent=11 // pred_fallthru
          _
        // Predicated region
        $region21: #{_forward_impl.1} parent=11 // pred_check
          %p402 = pneg %p114
        $region22: #{_forward_impl.1} parent=11 // pred_check_branch
          %404 = sbr.rel (%p402) target = $region24
        $region23: #{_forward_impl.1} parent=11 // pred_region
          _
        $region24: #{_forward_impl.1} parent=11 // pred_fallthru
          _
        // Predicated region
        $region25: #{_forward_impl.1} parent=11 // pred_check
          %p405 = pneg %p135
        $region26: #{_forward_impl.1} parent=11 // pred_check_branch
          %407 = sbr.rel (%p405) target = $region28
        $region27: #{_forward_impl.1} parent=11 // pred_region
          _
        $region28: #{_forward_impl.1} parent=11 // pred_fallthru
          _
        // Predicated region
        $region29: #{_forward_impl.1} parent=11 // pred_check
          %p408 = pneg %p156
        $region30: #{_forward_impl.1} parent=11 // pred_check_branch
          %410 = sbr.rel (%p408) target = $region32
        $region31: #{_forward_impl.1} parent=11 // pred_region
          _
        $region32: #{_forward_impl.1} parent=11 // pred_fallthru
          _
        // Predicated region
        $region33: #{_forward_impl.1} parent=11 // pred_check
          %p411 = pneg %p177
        $region34: #{_forward_impl.1} parent=11 // pred_check_branch
          %413 = sbr.rel (%p411) target = $region36
        $region35: #{_forward_impl.1} parent=11 // pred_region
          _
        $region36: #{_forward_impl.1} parent=11 // pred_fallthru
          _
        // Predicated region
        $region37: #{_forward_impl.1} parent=11 // pred_check
          %p414 = pneg %p198
        $region38: #{_forward_impl.1} parent=11 // pred_check_branch
          %416 = sbr.rel (%p414) target = $region40
        $region39: #{_forward_impl.1} parent=11 // pred_region
          _
        $region40: #{_forward_impl.1} parent=11 // pred_fallthru
          _
        // Predicated region
        $region41: #{_forward_impl.1} parent=11 // pred_check
          %p417 = pneg %p219
        $region42: #{_forward_impl.1} parent=11 // pred_check_branch
          %419 = sbr.rel (%p417) target = $region44
        $region43: #{_forward_impl.1} parent=11 // pred_region
          _
        $region44: #{_forward_impl.1} parent=11 // pred_fallthru
          _
        // Predicated region
        $region45: #{_forward_impl.1} parent=11 // pred_check
          %p420 = pneg %p240
        $region46: #{_forward_impl.1} parent=11 // pred_check_branch
          %422 = sbr.rel (%p420) target = $region48
        $region47: #{_forward_impl.1} parent=11 // pred_region
          _
        $region48: #{_forward_impl.1} parent=11 // pred_fallthru
          _
        // Predicated region
        $region49: #{_forward_impl.1} parent=11 // pred_check
          %p423 = pneg %p261
        $region50: #{_forward_impl.1} parent=11 // pred_check_branch
          %425 = sbr.rel (%p423) target = $region52
        $region51: #{_forward_impl.1} parent=11 // pred_region
          _
        $region52: #{_forward_impl.1} parent=11 // pred_fallthru
          _
        // Predicated region
        $region53: #{_forward_impl.1} parent=11 // pred_check
          %p426 = pneg %p282
        $region54: #{_forward_impl.1} parent=11 // pred_check_branch
          %428 = sbr.rel (%p426) target = $region56
        $region55: #{_forward_impl.1} parent=11 // pred_region
          %s430 = ssub.s32 3072, 3072
          %431 = vsyncadd [#allocation6], %s430
          %s432 = sshll.u32 [#allocation5], 4
          %s433 = int_to_ptr.vmem [resolvable:$true] %s432
          %438 = dma.hbm_to_vmem [thread:$0]  %s11, 3072, %s433, [#allocation6], 64, 64, 4
        $region56: #{_forward_impl.1} parent=11 // pred_fallthru
          _
        // Predicated region
        $region57: #{_forward_impl.1} parent=11 // pred_check
          %p439 = pneg %p303
        $region58: #{_forward_impl.1} parent=11 // pred_check_branch
          %441 = sbr.rel (%p439) target = $region60
        $region59: #{_forward_impl.1} parent=11 // pred_region
          _
        $region60: #{_forward_impl.1} parent=11 // pred_fallthru
          _
        // Predicated region
        $region61: #{_forward_impl.1} parent=11 // pred_check
          %p442 = pneg %p324
        $region62: #{_forward_impl.1} parent=11 // pred_check_branch
          %444 = sbr.rel (%p442) target = $region64
        $region63: #{_forward_impl.1} parent=11 // pred_region
          _
        $region64: #{_forward_impl.1} parent=11 // pred_fallthru
          _
        // Predicated region
        $region65: #{_forward_impl.1} parent=11 // pred_check
          %p445 = pneg %p345
        $region66: #{_forward_impl.1} parent=11 // pred_check_branch
          %447 = sbr.rel (%p445) target = $region68
        $region67: #{_forward_impl.1} parent=11 // pred_region
          _
        $region68: #{_forward_impl.1} parent=11 // pred_fallthru
          _
      $region12: #{_forward_impl.1} parent=5 // pred_fallthru
        _
      %p448 = scmp.lt.s32.totalorder %s25, 2
      // Predicated region
      $region69: #{_forward_impl.1} parent=5 // pred_check
        %p449 = pneg %p448
      $region70: #{_forward_impl.1} parent=5 // pred_check_branch
        %451 = sbr.rel (%p449) target = $region72
      $region71: #{_forward_impl.1} parent=5 // pred_region
        // Predicated region
        $region73: #{_forward_impl.1} parent=71 // pred_check
          %p452 = pneg %p45
        $region74: #{_forward_impl.1} parent=71 // pred_check_branch
          %454 = sbr.rel (%p452) target = $region76
        $region75: #{_forward_impl.1} parent=71 // pred_region
          %p455 = scmp.lt.s32.totalorder %s25, 1
          %s456 = scalar_select %p455, %s25, 1
          %s457 = smul.addr %s456, 2
          %s458 = smul.addr %s457, 8
          %s459 = scalar_lea.vmem %s0, %s458
        $region76: #{_forward_impl.1} parent=71 // pred_fallthru
          _
      $region72: #{_forward_impl.1} parent=5 // pred_fallthru
        _
      %p460 = scmp.le.s32.totalorder 1, %s25
      %p461 = scmp.lt.s32.totalorder %s25, 3
      %p462 = pnand %p460, %p461
      %p463 = pneg %p462
      // Predicated region
      $region77: #{_forward_impl.1} parent=5 // pred_check
        _
      $region78: #{_forward_impl.1} parent=5 // pred_check_branch
        %465 = sbr.rel (%p462) target = $region80
      $region79: #{_forward_impl.1} parent=5 // pred_region
        %s466 = ssub.s32 %s25, 1
        // Predicated region
        $region81: #{_forward_impl.1} parent=79 // pred_check
          %p467 = pneg %p93
        $region82: #{_forward_impl.1} parent=79 // pred_check_branch
          %469 = sbr.rel (%p467) target = $region84
        $region83: #{_forward_impl.1} parent=79 // pred_region
          %470 = dma.done [#allocation4], 1536
        $region84: #{_forward_impl.1} parent=79 // pred_fallthru
          _
        // Predicated region
        $region85: #{_forward_impl.1} parent=79 // pred_check
          %p471 = pneg %p282
        $region86: #{_forward_impl.1} parent=79 // pred_check_branch
          %473 = sbr.rel (%p471) target = $region88
        $region87: #{_forward_impl.1} parent=79 // pred_region
          %474 = dma.done [#allocation6], 3072
        $region88: #{_forward_impl.1} parent=79 // pred_fallthru
          _
        %p475 = scmp.lt.s32.totalorder %s30, 1
        %s476 = scalar_select %p475, %s30, 1
        %s477 = smul.addr %s476, 2
        %s478 = smul.addr %s477, 8
        %s479 = scalar_lea.vmem %s0, %s478
        %p480 = pneg %p51
        %p481 = pneg %p48
        %p482 = pneg %p72
        %p483 = pneg %p69
        %p484 = pneg %p93
        %p485 = pneg %p90
        %p486 = pneg %p114
        %p487 = pneg %p111
        %p488 = pneg %p135
        %p489 = pneg %p132
        %p490 = pneg %p156
        %p491 = pneg %p153
        %p492 = pneg %p177
        %p493 = pneg %p174
        %p494 = pneg %p198
        %p495 = pneg %p195
        %p496 = pneg %p219
        %p497 = pneg %p216
        %p498 = pneg %p240
        %p499 = pneg %p237
        %p500 = pneg %p261
        %p501 = pneg %p258
        %p502 = pneg %p282
        %p503 = pneg %p279
        %p504 = pneg %p303
        %p505 = pneg %p300
        %p506 = pneg %p324
        %p507 = pneg %p321
        %p508 = pneg %p345
        %p509 = pneg %p342
        %p510 = pneg %p371
        %p511 = pneg %p368
        %p512 = scmp.lt.s32.totalorder %s30, 1
        %s513 = scalar_select %p512, %s30, 1
        %s514 = scalar_lea.vmem %s15, %s513
        %p515 = scmp.lt.s32.totalorder %s30, 1
        %s516 = scalar_select %p515, %s30, 1
        %s517 = smul.addr %s516, 2
        %s518 = smul.addr %s517, 8
        %s519 = scalar_lea.vmem %s0, %s518
        %p520 = scmp.lt.s32.totalorder %s30, 1
        %s521 = scalar_select %p520, %s30, 1
        %s522 = scalar_lea.vmem %s15, %s521
        %v524 = vld [vmem:[%s519] sm:$0xff]
        %v525 = vld [vmem:[%s519 + $0x8] sm:$0xff]
        %v526 = vpack.c.bf16 %v525, %v524
        %v527 = vld [vmem:[%s1] sm:$0xf]
        %vm528 = vcmask 130048
        %v530 = vsel %vm528, %v527, 0
        %532 = vmatprep.subr.bf16.mxu0 0
        %533 = vmatpush1.bf16.msra.mxu0 0
        %534 = vmatprep.subr.bf16.mxu0 0
        %535 = vmatpush1.bf16.msra.mxu0 0
        %536 = vmatprep.subr.bf16.mxu0 0
        %537 = vmatpush1.bf16.msra.mxu0 0
        %538 = vmatprep.subr.bf16.mxu0 0
        %539 = vmatpush1.bf16.msra.mxu0 0
        %540 = vmatprep.subr.bf16.mxu0 0
        %541 = vmatpush1.bf16.msra.mxu0 0
        %542 = vmatprep.subr.bf16.mxu0 0
        %543 = vmatpush1.bf16.msra.mxu0 0
        %544 = vmatprep.subr.bf16.mxu0 0
        %545 = vmatpush1.bf16.msra.mxu0 0
        %546 = vmatprep.subr.bf16.mxu0 0
        %547 = vmatpush1.bf16.msra.mxu0 %v526
        %548 = vmatprep.subr.bf16.mxu0 0
        %549 = vmatpush2.bf16.msra.mxu0 0
        %550 = vmatprep.subr.bf16.mxu0 0
        %551 = vmatpush2.bf16.msra.mxu0 0
        %552 = vmatprep.subr.bf16.mxu0 0
        %553 = vmatpush2.bf16.msra.mxu0 0
        %554 = vmatprep.subr.bf16.mxu0 0
        %555 = vmatpush2.bf16.msra.mxu0 0
        %556 = vmatprep.subr.bf16.mxu0 0
        %557 = vmatpush2.bf16.msra.mxu0 0
        %558 = vmatprep.subr.bf16.mxu0 0
        %559 = vmatpush2.bf16.msra.mxu0 0
        %560 = vmatprep.subr.bf16.mxu0 0
        %561 = vmatpush2.bf16.msra.mxu0 0
        %562 = vmatprep.subr.bf16.mxu0 0
        %563 = vmatpush2.bf16.msra.mxu0 0
        %564 = vmatprep.mubr.bf16.mxu0 0
        %565 = vmatmul.mubr.bf16.gmra.mxu0 %v530
        %v566 = vpop.f32.mrf.mxu0
        %v567 = vadd.f32 0.0, %v566
        %v568 = vpop.f32.mrf.mxu0
        %v569 = vpop.f32.mrf.mxu0
        %v570 = vpop.f32.mrf.mxu0
        %571 = vdwg.mxu0
        %v572 = vpack.c.bf16 %v567, %v567
        %v573 = vld [vmem:[#allocation3] sm:$0xf]
        %v574 = vld [vmem:[#allocation3 + $0x4] sm:$0xf]
        %v575 = vld [vmem:[#allocation3 + $0x8] sm:$0xf]
        %v576 = vld [vmem:[#allocation3 + $0xc] sm:$0xf]
        %v577 = vld [vmem:[#allocation3 + $0x10] sm:$0xf]
        %v578 = vld [vmem:[#allocation3 + $0x14] sm:$0xf]
        %v579 = vld [vmem:[#allocation3 + $0x18] sm:$0xf]
        %v580 = vld [vmem:[#allocation3 + $0x1c] sm:$0xf]
        %s581 = scalar_lea.vmem %s1, 4
        %v582 = vld [vmem:[%s581] sm:$0xf]
        %v584 = vsel %vm528, %v582, 0
        %586 = vmatprep.subr.bf16.mxu0 0
        %587 = vmatpush1.bf16.msra.mxu0 0
        %588 = vmatprep.subr.bf16.mxu0 0
        %589 = vmatpush1.bf16.msra.mxu0 0
        %590 = vmatprep.subr.bf16.mxu0 0
        %591 = vmatpush1.bf16.msra.mxu0 0
        %592 = vmatprep.subr.bf16.mxu0 0
        %593 = vmatpush1.bf16.msra.mxu0 0
        %594 = vmatprep.subr.bf16.mxu0 0
        %595 = vmatpush1.bf16.msra.mxu0 0
        %596 = vmatprep.subr.bf16.mxu0 0
        %597 = vmatpush1.bf16.msra.mxu0 0
        %598 = vmatprep.subr.bf16.mxu0 0
        %599 = vmatpush1.bf16.msra.mxu0 0
        %600 = vmatprep.subr.bf16.mxu0 0
        %601 = vmatpush1.bf16.msra.mxu0 %v526
        %602 = vmatprep.subr.bf16.mxu0 0
        %603 = vmatpush2.bf16.msra.mxu0 0
        %604 = vmatprep.subr.bf16.mxu0 0
        %605 = vmatpush2.bf16.msra.mxu0 0
        %606 = vmatprep.subr.bf16.mxu0 0
        %607 = vmatpush2.bf16.msra.mxu0 0
        %608 = vmatprep.subr.bf16.mxu0 0
        %609 = vmatpush2.bf16.msra.mxu0 0
        %610 = vmatprep.subr.bf16.mxu0 0
        %611 = vmatpush2.bf16.msra.mxu0 0
        %612 = vmatprep.subr.bf16.mxu0 0
        %613 = vmatpush2.bf16.msra.mxu0 0
        %614 = vmatprep.subr.bf16.mxu0 0
        %615 = vmatpush2.bf16.msra.mxu0 0
        %616 = vmatprep.subr.bf16.mxu0 0
        %617 = vmatpush2.bf16.msra.mxu0 0
        %618 = vmatprep.mubr.bf16.mxu0 0
        %619 = vmatmul.mubr.bf16.gmra.mxu0 %v584
        %v620 = vpop.f32.mrf.mxu0
        %v621 = vadd.f32 0.0, %v620
        %v622 = vpop.f32.mrf.mxu0
        %v623 = vpop.f32.mrf.mxu0
        %v624 = vpop.f32.mrf.mxu0
        %625 = vdwg.mxu0
        %v626 = vpack.c.bf16 %v621, %v621
        %s627 = scalar_lea.vmem [#allocation3], 32
        %v628 = vld [vmem:[%s627] sm:$0xf]
        %v629 = vld [vmem:[%s627 + $0x4] sm:$0xf]
        %v630 = vld [vmem:[%s627 + $0x8] sm:$0xf]
        %v631 = vld [vmem:[%s627 + $0xc] sm:$0xf]
        %v632 = vld [vmem:[%s627 + $0x10] sm:$0xf]
        %v633 = vld [vmem:[%s627 + $0x14] sm:$0xf]
        %v634 = vld [vmem:[%s627 + $0x18] sm:$0xf]
        %v635 = vld [vmem:[%s627 + $0x1c] sm:$0xf]
        %v644 = vunpack.c.l.b16 %v628
        %v645 = vunpack.c.l.b16 %v629
        %v646 = vunpack.c.l.b16 %v630
        %v647 = vunpack.c.l.b16 %v631
        %v648 = vunpack.c.l.b16 %v632
        %v649 = vunpack.c.l.b16 %v633
        %v650 = vunpack.c.l.b16 %v634
        %v651 = vunpack.c.l.b16 %v635
        %v652 = vpack.c.b16 %v645, %v644
        %v653 = vpack.c.b16 %v647, %v646
        %v654 = vpack.c.b16 %v649, %v648
        %v655 = vpack.c.b16 %v651, %v650
        %vm660 = vcmask 523264
        %v662 = vsel %vm660, %v626, 0
        %664 = vmatprep.subr.bf16.mxu0 0
        %665 = vmatpush1.bf16.msra.mxu0 0
        %666 = vmatprep.subr.bf16.mxu0 0
        %667 = vmatpush1.bf16.msra.mxu0 0
        %668 = vmatprep.subr.bf16.mxu0 0
        %669 = vmatpush1.bf16.msra.mxu0 0
        %670 = vmatprep.subr.bf16.mxu0 0
        %671 = vmatpush1.bf16.msra.mxu0 0
        %672 = vmatprep.subr.bf16.mxu0 0
        %673 = vmatpush1.bf16.msra.mxu0 %v655
        %674 = vmatprep.subr.bf16.mxu0 0
        %675 = vmatpush1.bf16.msra.mxu0 %v654
        %676 = vmatprep.subr.bf16.mxu0 0
        %677 = vmatpush1.bf16.msra.mxu0 %v653
        %678 = vmatprep.subr.bf16.mxu0 0
        %679 = vmatpush1.bf16.msra.mxu0 %v652
        %680 = vmatprep.subr.bf16.mxu0 0
        %681 = vmatpush2.bf16.msra.mxu0 0
        %682 = vmatprep.subr.bf16.mxu0 0
        %683 = vmatpush2.bf16.msra.mxu0 0
        %684 = vmatprep.subr.bf16.mxu0 0
        %685 = vmatpush2.bf16.msra.mxu0 0
        %686 = vmatprep.subr.bf16.mxu0 0
        %687 = vmatpush2.bf16.msra.mxu0 0
        %688 = vmatprep.subr.bf16.mxu0 0
        %689 = vmatpush2.bf16.msra.mxu0 0
        %690 = vmatprep.subr.bf16.mxu0 0
        %691 = vmatpush2.bf16.msra.mxu0 0
        %692 = vmatprep.subr.bf16.mxu0 0
        %693 = vmatpush2.bf16.msra.mxu0 0
        %694 = vmatprep.subr.bf16.mxu0 0
        %695 = vmatpush2.bf16.msra.mxu0 0
        %696 = vmatprep.mubr.bf16.mxu0 0
        %697 = vmatmul.mubr.bf16.gmra.mxu0 %v662
        %v698 = vpop.f32.mrf.mxu0
        %v699 = vadd.f32 0.0, %v698
        %v700 = vpop.f32.mrf.mxu0
        %v701 = vpop.f32.mrf.mxu0
        %v702 = vpop.f32.mrf.mxu0
        %703 = vdwg.mxu0
        %v712 = vunpack.c.l.b16 %v573
        %v713 = vunpack.c.l.b16 %v574
        %v714 = vunpack.c.l.b16 %v575
        %v715 = vunpack.c.l.b16 %v576
        %v716 = vunpack.c.l.b16 %v577
        %v717 = vunpack.c.l.b16 %v578
        %v718 = vunpack.c.l.b16 %v579
        %v719 = vunpack.c.l.b16 %v580
        %v720 = vpack.c.b16 %v713, %v712
        %v721 = vpack.c.b16 %v715, %v714
        %v722 = vpack.c.b16 %v717, %v716
        %v723 = vpack.c.b16 %v719, %v718
        %v729 = vsel %vm660, %v572, 0
        %731 = vmatprep.subr.bf16.mxu0 0
        %732 = vmatpush1.bf16.msra.mxu0 0
        %733 = vmatprep.subr.bf16.mxu0 0
        %734 = vmatpush1.bf16.msra.mxu0 0
        %735 = vmatprep.subr.bf16.mxu0 0
        %736 = vmatpush1.bf16.msra.mxu0 0
        %737 = vmatprep.subr.bf16.mxu0 0
        %738 = vmatpush1.bf16.msra.mxu0 0
        %739 = vmatprep.subr.bf16.mxu0 0
        %740 = vmatpush1.bf16.msra.mxu0 %v723
        %741 = vmatprep.subr.bf16.mxu0 0
        %742 = vmatpush1.bf16.msra.mxu0 %v722
        %743 = vmatprep.subr.bf16.mxu0 0
        %744 = vmatpush1.bf16.msra.mxu0 %v721
        %745 = vmatprep.subr.bf16.mxu0 0
        %746 = vmatpush1.bf16.msra.mxu0 %v720
        %747 = vmatprep.subr.bf16.mxu0 0
        %748 = vmatpush2.bf16.msra.mxu0 0
        %749 = vmatprep.subr.bf16.mxu0 0
        %750 = vmatpush2.bf16.msra.mxu0 0
        %751 = vmatprep.subr.bf16.mxu0 0
        %752 = vmatpush2.bf16.msra.mxu0 0
        %753 = vmatprep.subr.bf16.mxu0 0
        %754 = vmatpush2.bf16.msra.mxu0 0
        %755 = vmatprep.subr.bf16.mxu0 0
        %756 = vmatpush2.bf16.msra.mxu0 0
        %757 = vmatprep.subr.bf16.mxu0 0
        %758 = vmatpush2.bf16.msra.mxu0 0
        %759 = vmatprep.subr.bf16.mxu0 0
        %760 = vmatpush2.bf16.msra.mxu0 0
        %761 = vmatprep.subr.bf16.mxu0 0
        %762 = vmatpush2.bf16.msra.mxu0 0
        %763 = vmatprep.mubr.bf16.mxu0 0
        %764 = vmatmul.mubr.bf16.gmra.mxu0 %v729
        %v765 = vpop.f32.mrf.mxu0
        %v766 = vadd.f32 %v699, %v765
        %v767 = vpop.f32.mrf.mxu0
        %v768 = vpop.f32.mrf.mxu0
        %v769 = vpop.f32.mrf.mxu0
        %770 = vdwg.mxu0
        %s771 = scalar_lea.vmem %s1, 8
        %v772 = vld [vmem:[%s771] sm:$0xf]
        %v774 = vsel %vm528, %v772, 0
        %776 = vmatprep.subr.bf16.mxu0 0
        %777 = vmatpush1.bf16.msra.mxu0 0
        %778 = vmatprep.subr.bf16.mxu0 0
        %779 = vmatpush1.bf16.msra.mxu0 0
        %780 = vmatprep.subr.bf16.mxu0 0
        %781 = vmatpush1.bf16.msra.mxu0 0
        %782 = vmatprep.subr.bf16.mxu0 0
        %783 = vmatpush1.bf16.msra.mxu0 0
        %784 = vmatprep.subr.bf16.mxu0 0
        %785 = vmatpush1.bf16.msra.mxu0 0
        %786 = vmatprep.subr.bf16.mxu0 0
        %787 = vmatpush1.bf16.msra.mxu0 0
        %788 = vmatprep.subr.bf16.mxu0 0
        %789 = vmatpush1.bf16.msra.mxu0 0
        %790 = vmatprep.subr.bf16.mxu0 0
        %791 = vmatpush1.bf16.msra.mxu0 %v526
        %792 = vmatprep.subr.bf16.mxu0 0
        %793 = vmatpush2.bf16.msra.mxu0 0
        %794 = vmatprep.subr.bf16.mxu0 0
        %795 = vmatpush2.bf16.msra.mxu0 0
        %796 = vmatprep.subr.bf16.mxu0 0
        %797 = vmatpush2.bf16.msra.mxu0 0
        %798 = vmatprep.subr.bf16.mxu0 0
        %799 = vmatpush2.bf16.msra.mxu0 0
        %800 = vmatprep.subr.bf16.mxu0 0
        %801 = vmatpush2.bf16.msra.mxu0 0
        %802 = vmatprep.subr.bf16.mxu0 0
        %803 = vmatpush2.bf16.msra.mxu0 0
        %804 = vmatprep.subr.bf16.mxu0 0
        %805 = vmatpush2.bf16.msra.mxu0 0
        %806 = vmatprep.subr.bf16.mxu0 0
        %807 = vmatpush2.bf16.msra.mxu0 0
        %808 = vmatprep.mubr.bf16.mxu0 0
        %809 = vmatmul.mubr.bf16.gmra.mxu0 %v774
        %v810 = vpop.f32.mrf.mxu0
        %v811 = vadd.f32 0.0, %v810
        %v812 = vpop.f32.mrf.mxu0
        %v813 = vpop.f32.mrf.mxu0
        %v814 = vpop.f32.mrf.mxu0
        %815 = vdwg.mxu0
        %v816 = vpack.c.bf16 %v811, %v811
        %s817 = scalar_lea.vmem [#allocation3], 64
        %v818 = vld [vmem:[%s817] sm:$0xf]
        %v819 = vld [vmem:[%s817 + $0x4] sm:$0xf]
        %v820 = vld [vmem:[%s817 + $0x8] sm:$0xf]
        %v821 = vld [vmem:[%s817 + $0xc] sm:$0xf]
        %v822 = vld [vmem:[%s817 + $0x10] sm:$0xf]
        %v823 = vld [vmem:[%s817 + $0x14] sm:$0xf]
        %v824 = vld [vmem:[%s817 + $0x18] sm:$0xf]
        %v825 = vld [vmem:[%s817 + $0x1c] sm:$0xf]
        %v834 = vunpack.c.l.b16 %v818
        %v835 = vunpack.c.l.b16 %v819
        %v836 = vunpack.c.l.b16 %v820
        %v837 = vunpack.c.l.b16 %v821
        %v838 = vunpack.c.l.b16 %v822
        %v839 = vunpack.c.l.b16 %v823
        %v840 = vunpack.c.l.b16 %v824
        %v841 = vunpack.c.l.b16 %v825
        %v842 = vpack.c.b16 %v835, %v834
        %v843 = vpack.c.b16 %v837, %v836
        %v844 = vpack.c.b16 %v839, %v838
        %v845 = vpack.c.b16 %v841, %v840
        %v851 = vsel %vm660, %v816, 0
        %853 = vmatprep.subr.bf16.mxu0 0
        %854 = vmatpush1.bf16.msra.mxu0 0
        %855 = vmatprep.subr.bf16.mxu0 0
        %856 = vmatpush1.bf16.msra.mxu0 0
        %857 = vmatprep.subr.bf16.mxu0 0
        %858 = vmatpush1.bf16.msra.mxu0 0
        %859 = vmatprep.subr.bf16.mxu0 0
        %860 = vmatpush1.bf16.msra.mxu0 0
        %861 = vmatprep.subr.bf16.mxu0 0
        %862 = vmatpush1.bf16.msra.mxu0 %v845
        %863 = vmatprep.subr.bf16.mxu0 0
        %864 = vmatpush1.bf16.msra.mxu0 %v844
        %865 = vmatprep.subr.bf16.mxu0 0
        %866 = vmatpush1.bf16.msra.mxu0 %v843
        %867 = vmatprep.subr.bf16.mxu0 0
        %868 = vmatpush1.bf16.msra.mxu0 %v842
        %869 = vmatprep.subr.bf16.mxu0 0
        %870 = vmatpush2.bf16.msra.mxu0 0
        %871 = vmatprep.subr.bf16.mxu0 0
        %872 = vmatpush2.bf16.msra.mxu0 0
        %873 = vmatprep.subr.bf16.mxu0 0
        %874 = vmatpush2.bf16.msra.mxu0 0
        %875 = vmatprep.subr.bf16.mxu0 0
        %876 = vmatpush2.bf16.msra.mxu0 0
        %877 = vmatprep.subr.bf16.mxu0 0
        %878 = vmatpush2.bf16.msra.mxu0 0
        %879 = vmatprep.subr.bf16.mxu0 0
        %880 = vmatpush2.bf16.msra.mxu0 0
        %881 = vmatprep.subr.bf16.mxu0 0
        %882 = vmatpush2.bf16.msra.mxu0 0
        %883 = vmatprep.subr.bf16.mxu0 0
        %884 = vmatpush2.bf16.msra.mxu0 0
        %885 = vmatprep.mubr.bf16.mxu0 0
        %886 = vmatmul.mubr.bf16.gmra.mxu0 %v851
        %v887 = vpop.f32.mrf.mxu0
        %v888 = vadd.f32 0.0, %v887
        %v889 = vpop.f32.mrf.mxu0
        %v890 = vpop.f32.mrf.mxu0
        %v891 = vpop.f32.mrf.mxu0
        %892 = vdwg.mxu0
        %v893 = vadd.f32 %v766, %v888
        %v894 = vld [vmem:[%s3] sm:$0x1]
        %v896 = vlaneseq
        %v897 = vshrl.u32 %v896, 7
        %v898 = vsub.s32 0, %v897
        %v899 = vrot.slane %v894, %v898
        %v901 = vadd.f32 %v893, %v899
        %vm902 = vcmp.gt.f32.partialorder %v901, 0.0
        %v903 = vmul.f32 %v901, 0.2
        %v904 = vsel %vm902, %v901, %v903
        %s905 = scalar_lea.vmem %s3, 1
        %v906 = vld [vmem:[%s905] sm:$0x1]
        %v908 = vlaneseq
        %v909 = vshrl.u32 %v908, 7
        %v910 = vsub.s32 0, %v909
        %v911 = vrot.slane %v906, %v910
        %v913 = vadd.f32 %v904, %v911
        %v914 = vpack.c.bf16 %v913, %v913
        %v915 = vld [vmem:[%s4] sm:$0x3]
        %vm916 = vcmask 64512
        %v918 = vsel %vm916, %v915, 0
        %vm920 = vcmask 1043456
        %v922 = vsel %vm920, %v914, 0
        %924 = vmatprep.subr.bf16.mxu0 0
        %925 = vmatpush1.bf16.msra.mxu0 0
        %926 = vmatprep.subr.bf16.mxu0 0
        %927 = vmatpush1.bf16.msra.mxu0 0
        %928 = vmatprep.subr.bf16.mxu0 0
        %929 = vmatpush1.bf16.msra.mxu0 0
        %930 = vmatprep.subr.bf16.mxu0 0
        %931 = vmatpush1.bf16.msra.mxu0 0
        %932 = vmatprep.subr.bf16.mxu0 0
        %933 = vmatpush1.bf16.msra.mxu0 0
        %934 = vmatprep.subr.bf16.mxu0 0
        %935 = vmatpush1.bf16.msra.mxu0 0
        %936 = vmatprep.subr.bf16.mxu0 0
        %937 = vmatpush1.bf16.msra.mxu0 0
        %938 = vmatprep.subr.bf16.mxu0 0
        %939 = vmatpush1.bf16.msra.mxu0 %v922
        %940 = vmatprep.subr.bf16.mxu0 0
        %941 = vmatpush2.bf16.msra.mxu0 0
        %942 = vmatprep.subr.bf16.mxu0 0
        %943 = vmatpush2.bf16.msra.mxu0 0
        %944 = vmatprep.subr.bf16.mxu0 0
        %945 = vmatpush2.bf16.msra.mxu0 0
        %946 = vmatprep.subr.bf16.mxu0 0
        %947 = vmatpush2.bf16.msra.mxu0 0
        %948 = vmatprep.subr.bf16.mxu0 0
        %949 = vmatpush2.bf16.msra.mxu0 0
        %950 = vmatprep.subr.bf16.mxu0 0
        %951 = vmatpush2.bf16.msra.mxu0 0
        %952 = vmatprep.subr.bf16.mxu0 0
        %953 = vmatpush2.bf16.msra.mxu0 0
        %954 = vmatprep.subr.bf16.mxu0 0
        %955 = vmatpush2.bf16.msra.mxu0 0
        %956 = vmatprep.mubr.bf16.mxu0 0
        %957 = vmatmul.mubr.bf16.gmra.mxu0 %v918
        %v958 = vpop.f32.mrf.mxu0
        %v959 = vadd.f32 0.0, %v958
        %v960 = vpop.f32.mrf.mxu0
        %v961 = vpop.f32.mrf.mxu0
        %v962 = vpop.f32.mrf.mxu0
        %963 = vdwg.mxu0
        %v964 = vpack.c.bf16 %v959, %v959
        %v965 = vld [vmem:[%s5] sm:$0xf]
        %v966 = vld [vmem:[%s5 + $0x4] sm:$0xf]
        %v967 = vld [vmem:[%s5 + $0x8] sm:$0xf]
        %v968 = vld [vmem:[%s5 + $0xc] sm:$0xf]
        %v969 = vld [vmem:[%s5 + $0x10] sm:$0xf]
        %v970 = vld [vmem:[%s5 + $0x14] sm:$0xf]
        %v971 = vld [vmem:[%s5 + $0x18] sm:$0xf]
        %v972 = vld [vmem:[%s5 + $0x1c] sm:$0xf]
        %v973 = vld [vmem:[%s5 + $0x20] sm:$0xf]
        %v974 = vld [vmem:[%s5 + $0x24] sm:$0xf]
        %v975 = vld [vmem:[%s5 + $0x28] sm:$0xf]
        %v976 = vld [vmem:[%s5 + $0x2c] sm:$0xf]
        %v977 = vld [vmem:[%s5 + $0x30] sm:$0xf]
        %v978 = vld [vmem:[%s5 + $0x34] sm:$0xf]
        %v979 = vld [vmem:[%s5 + $0x38] sm:$0xf]
        %v980 = vld [vmem:[%s5 + $0x3c] sm:$0xf]
        %s981 = scalar_lea.vmem %s4, 2
        %v982 = vld [vmem:[%s981] sm:$0x3]
        %v984 = vsel %vm916, %v982, 0
        %986 = vmatprep.subr.bf16.mxu0 0
        %987 = vmatpush1.bf16.msra.mxu0 0
        %988 = vmatprep.subr.bf16.mxu0 0
        %989 = vmatpush1.bf16.msra.mxu0 0
        %990 = vmatprep.subr.bf16.mxu0 0
        %991 = vmatpush1.bf16.msra.mxu0 0
        %992 = vmatprep.subr.bf16.mxu0 0
        %993 = vmatpush1.bf16.msra.mxu0 0
        %994 = vmatprep.subr.bf16.mxu0 0
        %995 = vmatpush1.bf16.msra.mxu0 0
        %996 = vmatprep.subr.bf16.mxu0 0
        %997 = vmatpush1.bf16.msra.mxu0 0
        %998 = vmatprep.subr.bf16.mxu0 0
        %999 = vmatpush1.bf16.msra.mxu0 0
        %1000 = vmatprep.subr.bf16.mxu0 0
        %1001 = vmatpush1.bf16.msra.mxu0 %v922
        %1002 = vmatprep.subr.bf16.mxu0 0
        %1003 = vmatpush2.bf16.msra.mxu0 0
        %1004 = vmatprep.subr.bf16.mxu0 0
        %1005 = vmatpush2.bf16.msra.mxu0 0
        %1006 = vmatprep.subr.bf16.mxu0 0
        %1007 = vmatpush2.bf16.msra.mxu0 0
        %1008 = vmatprep.subr.bf16.mxu0 0
        %1009 = vmatpush2.bf16.msra.mxu0 0
        %1010 = vmatprep.subr.bf16.mxu0 0
        %1011 = vmatpush2.bf16.msra.mxu0 0
        %1012 = vmatprep.subr.bf16.mxu0 0
        %1013 = vmatpush2.bf16.msra.mxu0 0
        %1014 = vmatprep.subr.bf16.mxu0 0
        %1015 = vmatpush2.bf16.msra.mxu0 0
        %1016 = vmatprep.subr.bf16.mxu0 0
        %1017 = vmatpush2.bf16.msra.mxu0 0
        %1018 = vmatprep.mubr.bf16.mxu0 0
        %1019 = vmatmul.mubr.bf16.gmra.mxu0 %v984
        %v1020 = vpop.f32.mrf.mxu0
        %v1021 = vadd.f32 0.0, %v1020
        %v1022 = vpop.f32.mrf.mxu0
        %v1023 = vpop.f32.mrf.mxu0
        %v1024 = vpop.f32.mrf.mxu0
        %1025 = vdwg.mxu0
        %v1026 = vpack.c.bf16 %v1021, %v1021
        %s1027 = scalar_lea.vmem %s5, 64
        %v1028 = vld [vmem:[%s1027] sm:$0xf]
        %v1029 = vld [vmem:[%s1027 + $0x4] sm:$0xf]
        %v1030 = vld [vmem:[%s1027 + $0x8] sm:$0xf]
        %v1031 = vld [vmem:[%s1027 + $0xc] sm:$0xf]
        %v1032 = vld [vmem:[%s1027 + $0x10] sm:$0xf]
        %v1033 = vld [vmem:[%s1027 + $0x14] sm:$0xf]
        %v1034 = vld [vmem:[%s1027 + $0x18] sm:$0xf]
        %v1035 = vld [vmem:[%s1027 + $0x1c] sm:$0xf]
        %v1036 = vld [vmem:[%s1027 + $0x20] sm:$0xf]
        %v1037 = vld [vmem:[%s1027 + $0x24] sm:$0xf]
        %v1038 = vld [vmem:[%s1027 + $0x28] sm:$0xf]
        %v1039 = vld [vmem:[%s1027 + $0x2c] sm:$0xf]
        %v1040 = vld [vmem:[%s1027 + $0x30] sm:$0xf]
        %v1041 = vld [vmem:[%s1027 + $0x34] sm:$0xf]
        %v1042 = vld [vmem:[%s1027 + $0x38] sm:$0xf]
        %v1043 = vld [vmem:[%s1027 + $0x3c] sm:$0xf]
        %v1060 = vunpack.c.l.b16 %v1028
        %v1061 = vunpack.c.l.b16 %v1029
        %v1062 = vunpack.c.l.b16 %v1030
        %v1063 = vunpack.c.l.b16 %v1031
        %v1064 = vunpack.c.l.b16 %v1032
        %v1065 = vunpack.c.l.b16 %v1033
        %v1066 = vunpack.c.l.b16 %v1034
        %v1067 = vunpack.c.l.b16 %v1035
        %v1068 = vunpack.c.l.b16 %v1036
        %v1069 = vunpack.c.l.b16 %v1037
        %v1070 = vunpack.c.l.b16 %v1038
        %v1071 = vunpack.c.l.b16 %v1039
        %v1072 = vunpack.c.l.b16 %v1040
        %v1073 = vunpack.c.l.b16 %v1041
        %v1074 = vunpack.c.l.b16 %v1042
        %v1075 = vunpack.c.l.b16 %v1043
        %v1076 = vpack.c.b16 %v1061, %v1060
        %v1077 = vpack.c.b16 %v1063, %v1062
        %v1078 = vpack.c.b16 %v1065, %v1064
        %v1079 = vpack.c.b16 %v1067, %v1066
        %v1080 = vpack.c.b16 %v1069, %v1068
        %v1081 = vpack.c.b16 %v1071, %v1070
        %v1082 = vpack.c.b16 %v1073, %v1072
        %v1083 = vpack.c.b16 %v1075, %v1074
        %1092 = vmatprep.subr.bf16.mxu0 0
        %1093 = vmatpush1.bf16.msra.mxu0 %v1083
        %1094 = vmatprep.subr.bf16.mxu0 0
        %1095 = vmatpush1.bf16.msra.mxu0 %v1082
        %1096 = vmatprep.subr.bf16.mxu0 0
        %1097 = vmatpush1.bf16.msra.mxu0 %v1081
        %1098 = vmatprep.subr.bf16.mxu0 0
        %1099 = vmatpush1.bf16.msra.mxu0 %v1080
        %1100 = vmatprep.subr.bf16.mxu0 0
        %1101 = vmatpush1.bf16.msra.mxu0 %v1079
        %1102 = vmatprep.subr.bf16.mxu0 0
        %1103 = vmatpush1.bf16.msra.mxu0 %v1078
        %1104 = vmatprep.subr.bf16.mxu0 0
        %1105 = vmatpush1.bf16.msra.mxu0 %v1077
        %1106 = vmatprep.subr.bf16.mxu0 0
        %1107 = vmatpush1.bf16.msra.mxu0 %v1076
        %1108 = vmatprep.subr.bf16.mxu0 0
        %1109 = vmatpush2.bf16.msra.mxu0 0
        %1110 = vmatprep.subr.bf16.mxu0 0
        %1111 = vmatpush2.bf16.msra.mxu0 0
        %1112 = vmatprep.subr.bf16.mxu0 0
        %1113 = vmatpush2.bf16.msra.mxu0 0
        %1114 = vmatprep.subr.bf16.mxu0 0
        %1115 = vmatpush2.bf16.msra.mxu0 0
        %1116 = vmatprep.subr.bf16.mxu0 0
        %1117 = vmatpush2.bf16.msra.mxu0 0
        %1118 = vmatprep.subr.bf16.mxu0 0
        %1119 = vmatpush2.bf16.msra.mxu0 0
        %1120 = vmatprep.subr.bf16.mxu0 0
        %1121 = vmatpush2.bf16.msra.mxu0 0
        %1122 = vmatprep.subr.bf16.mxu0 0
        %1123 = vmatpush2.bf16.msra.mxu0 0
        %1124 = vmatprep.mubr.bf16.mxu0 0
        %1125 = vmatmul.mubr.bf16.gmra.mxu0 %v1026
        %v1126 = vpop.f32.mrf.mxu0
        %v1127 = vadd.f32 0.0, %v1126
        %v1128 = vpop.f32.mrf.mxu0
        %v1129 = vpop.f32.mrf.mxu0
        %v1130 = vpop.f32.mrf.mxu0
        %1131 = vdwg.mxu0
        %v1148 = vunpack.c.l.b16 %v965
        %v1149 = vunpack.c.l.b16 %v966
        %v1150 = vunpack.c.l.b16 %v967
        %v1151 = vunpack.c.l.b16 %v968
        %v1152 = vunpack.c.l.b16 %v969
        %v1153 = vunpack.c.l.b16 %v970
        %v1154 = vunpack.c.l.b16 %v971
        %v1155 = vunpack.c.l.b16 %v972
        %v1156 = vunpack.c.l.b16 %v973
        %v1157 = vunpack.c.l.b16 %v974
        %v1158 = vunpack.c.l.b16 %v975
        %v1159 = vunpack.c.l.b16 %v976
        %v1160 = vunpack.c.l.b16 %v977
        %v1161 = vunpack.c.l.b16 %v978
        %v1162 = vunpack.c.l.b16 %v979
        %v1163 = vunpack.c.l.b16 %v980
        %v1164 = vpack.c.b16 %v1149, %v1148
        %v1165 = vpack.c.b16 %v1151, %v1150
        %v1166 = vpack.c.b16 %v1153, %v1152
        %v1167 = vpack.c.b16 %v1155, %v1154
        %v1168 = vpack.c.b16 %v1157, %v1156
        %v1169 = vpack.c.b16 %v1159, %v1158
        %v1170 = vpack.c.b16 %v1161, %v1160
        %v1171 = vpack.c.b16 %v1163, %v1162
        %1180 = vmatprep.subr.bf16.mxu0 0
        %1181 = vmatpush1.bf16.msra.mxu0 %v1171
        %1182 = vmatprep.subr.bf16.mxu0 0
        %1183 = vmatpush1.bf16.msra.mxu0 %v1170
        %1184 = vmatprep.subr.bf16.mxu0 0
        %1185 = vmatpush1.bf16.msra.mxu0 %v1169
        %1186 = vmatprep.subr.bf16.mxu0 0
        %1187 = vmatpush1.bf16.msra.mxu0 %v1168
        %1188 = vmatprep.subr.bf16.mxu0 0
        %1189 = vmatpush1.bf16.msra.mxu0 %v1167
        %1190 = vmatprep.subr.bf16.mxu0 0
        %1191 = vmatpush1.bf16.msra.mxu0 %v1166
        %1192 = vmatprep.subr.bf16.mxu0 0
        %1193 = vmatpush1.bf16.msra.mxu0 %v1165
        %1194 = vmatprep.subr.bf16.mxu0 0
        %1195 = vmatpush1.bf16.msra.mxu0 %v1164
        %1196 = vmatprep.subr.bf16.mxu0 0
        %1197 = vmatpush2.bf16.msra.mxu0 0
        %1198 = vmatprep.subr.bf16.mxu0 0
        %1199 = vmatpush2.bf16.msra.mxu0 0
        %1200 = vmatprep.subr.bf16.mxu0 0
        %1201 = vmatpush2.bf16.msra.mxu0 0
        %1202 = vmatprep.subr.bf16.mxu0 0
        %1203 = vmatpush2.bf16.msra.mxu0 0
        %1204 = vmatprep.subr.bf16.mxu0 0
        %1205 = vmatpush2.bf16.msra.mxu0 0
        %1206 = vmatprep.subr.bf16.mxu0 0
        %1207 = vmatpush2.bf16.msra.mxu0 0
        %1208 = vmatprep.subr.bf16.mxu0 0
        %1209 = vmatpush2.bf16.msra.mxu0 0
        %1210 = vmatprep.subr.bf16.mxu0 0
        %1211 = vmatpush2.bf16.msra.mxu0 0
        %1212 = vmatprep.mubr.bf16.mxu0 0
        %1213 = vmatmul.mubr.bf16.gmra.mxu0 %v964
        %v1214 = vpop.f32.mrf.mxu0
        %v1215 = vadd.f32 %v1127, %v1214
        %v1216 = vpop.f32.mrf.mxu0
        %v1217 = vpop.f32.mrf.mxu0
        %v1218 = vpop.f32.mrf.mxu0
        %1219 = vdwg.mxu0
        %s1220 = scalar_lea.vmem %s4, 4
        %v1221 = vld [vmem:[%s1220] sm:$0x3]
        %v1223 = vsel %vm916, %v1221, 0
        %1225 = vmatprep.subr.bf16.mxu0 0
        %1226 = vmatpush1.bf16.msra.mxu0 0
        %1227 = vmatprep.subr.bf16.mxu0 0
        %1228 = vmatpush1.bf16.msra.mxu0 0
        %1229 = vmatprep.subr.bf16.mxu0 0
        %1230 = vmatpush1.bf16.msra.mxu0 0
        %1231 = vmatprep.subr.bf16.mxu0 0
        %1232 = vmatpush1.bf16.msra.mxu0 0
        %1233 = vmatprep.subr.bf16.mxu0 0
        %1234 = vmatpush1.bf16.msra.mxu0 0
        %1235 = vmatprep.subr.bf16.mxu0 0
        %1236 = vmatpush1.bf16.msra.mxu0 0
        %1237 = vmatprep.subr.bf16.mxu0 0
        %1238 = vmatpush1.bf16.msra.mxu0 0
        %1239 = vmatprep.subr.bf16.mxu0 0
        %1240 = vmatpush1.bf16.msra.mxu0 %v922
        %1241 = vmatprep.subr.bf16.mxu0 0
        %1242 = vmatpush2.bf16.msra.mxu0 0
        %1243 = vmatprep.subr.bf16.mxu0 0
        %1244 = vmatpush2.bf16.msra.mxu0 0
        %1245 = vmatprep.subr.bf16.mxu0 0
        %1246 = vmatpush2.bf16.msra.mxu0 0
        %1247 = vmatprep.subr.bf16.mxu0 0
        %1248 = vmatpush2.bf16.msra.mxu0 0
        %1249 = vmatprep.subr.bf16.mxu0 0
        %1250 = vmatpush2.bf16.msra.mxu0 0
        %1251 = vmatprep.subr.bf16.mxu0 0
        %1252 = vmatpush2.bf16.msra.mxu0 0
        %1253 = vmatprep.subr.bf16.mxu0 0
        %1254 = vmatpush2.bf16.msra.mxu0 0
        %1255 = vmatprep.subr.bf16.mxu0 0
        %1256 = vmatpush2.bf16.msra.mxu0 0
        %1257 = vmatprep.mubr.bf16.mxu0 0
        %1258 = vmatmul.mubr.bf16.gmra.mxu0 %v1223
        %v1259 = vpop.f32.mrf.mxu0
        %v1260 = vadd.f32 0.0, %v1259
        %v1261 = vpop.f32.mrf.mxu0
        %v1262 = vpop.f32.mrf.mxu0
        %v1263 = vpop.f32.mrf.mxu0
        %1264 = vdwg.mxu0
        %v1265 = vpack.c.bf16 %v1260, %v1260
        %s1266 = scalar_lea.vmem %s5, 128
        %v1267 = vld [vmem:[%s1266] sm:$0xf]
        %v1268 = vld [vmem:[%s1266 + $0x4] sm:$0xf]
        %v1269 = vld [vmem:[%s1266 + $0x8] sm:$0xf]
        %v1270 = vld [vmem:[%s1266 + $0xc] sm:$0xf]
        %v1271 = vld [vmem:[%s1266 + $0x10] sm:$0xf]
        %v1272 = vld [vmem:[%s1266 + $0x14] sm:$0xf]
        %v1273 = vld [vmem:[%s1266 + $0x18] sm:$0xf]
        %v1274 = vld [vmem:[%s1266 + $0x1c] sm:$0xf]
        %v1275 = vld [vmem:[%s1266 + $0x20] sm:$0xf]
        %v1276 = vld [vmem:[%s1266 + $0x24] sm:$0xf]
        %v1277 = vld [vmem:[%s1266 + $0x28] sm:$0xf]
        %v1278 = vld [vmem:[%s1266 + $0x2c] sm:$0xf]
        %v1279 = vld [vmem:[%s1266 + $0x30] sm:$0xf]
        %v1280 = vld [vmem:[%s1266 + $0x34] sm:$0xf]
        %v1281 = vld [vmem:[%s1266 + $0x38] sm:$0xf]
        %v1282 = vld [vmem:[%s1266 + $0x3c] sm:$0xf]
        %v1299 = vunpack.c.l.b16 %v1267
        %v1300 = vunpack.c.l.b16 %v1268
        %v1301 = vunpack.c.l.b16 %v1269
        %v1302 = vunpack.c.l.b16 %v1270
        %v1303 = vunpack.c.l.b16 %v1271
        %v1304 = vunpack.c.l.b16 %v1272
        %v1305 = vunpack.c.l.b16 %v1273
        %v1306 = vunpack.c.l.b16 %v1274
        %v1307 = vunpack.c.l.b16 %v1275
        %v1308 = vunpack.c.l.b16 %v1276
        %v1309 = vunpack.c.l.b16 %v1277
        %v1310 = vunpack.c.l.b16 %v1278
        %v1311 = vunpack.c.l.b16 %v1279
        %v1312 = vunpack.c.l.b16 %v1280
        %v1313 = vunpack.c.l.b16 %v1281
        %v1314 = vunpack.c.l.b16 %v1282
        %v1315 = vpack.c.b16 %v1300, %v1299
        %v1316 = vpack.c.b16 %v1302, %v1301
        %v1317 = vpack.c.b16 %v1304, %v1303
        %v1318 = vpack.c.b16 %v1306, %v1305
        %v1319 = vpack.c.b16 %v1308, %v1307
        %v1320 = vpack.c.b16 %v1310, %v1309
        %v1321 = vpack.c.b16 %v1312, %v1311
        %v1322 = vpack.c.b16 %v1314, %v1313
        %1331 = vmatprep.subr.bf16.mxu0 0
        %1332 = vmatpush1.bf16.msra.mxu0 %v1322
        %1333 = vmatprep.subr.bf16.mxu0 0
        %1334 = vmatpush1.bf16.msra.mxu0 %v1321
        %1335 = vmatprep.subr.bf16.mxu0 0
        %1336 = vmatpush1.bf16.msra.mxu0 %v1320
        %1337 = vmatprep.subr.bf16.mxu0 0
        %1338 = vmatpush1.bf16.msra.mxu0 %v1319
        %1339 = vmatprep.subr.bf16.mxu0 0
        %1340 = vmatpush1.bf16.msra.mxu0 %v1318
        %1341 = vmatprep.subr.bf16.mxu0 0
        %1342 = vmatpush1.bf16.msra.mxu0 %v1317
        %1343 = vmatprep.subr.bf16.mxu0 0
        %1344 = vmatpush1.bf16.msra.mxu0 %v1316
        %1345 = vmatprep.subr.bf16.mxu0 0
        %1346 = vmatpush1.bf16.msra.mxu0 %v1315
        %1347 = vmatprep.subr.bf16.mxu0 0
        %1348 = vmatpush2.bf16.msra.mxu0 0
        %1349 = vmatprep.subr.bf16.mxu0 0
        %1350 = vmatpush2.bf16.msra.mxu0 0
        %1351 = vmatprep.subr.bf16.mxu0 0
        %1352 = vmatpush2.bf16.msra.mxu0 0
        %1353 = vmatprep.subr.bf16.mxu0 0
        %1354 = vmatpush2.bf16.msra.mxu0 0
        %1355 = vmatprep.subr.bf16.mxu0 0
        %1356 = vmatpush2.bf16.msra.mxu0 0
        %1357 = vmatprep.subr.bf16.mxu0 0
        %1358 = vmatpush2.bf16.msra.mxu0 0
        %1359 = vmatprep.subr.bf16.mxu0 0
        %1360 = vmatpush2.bf16.msra.mxu0 0
        %1361 = vmatprep.subr.bf16.mxu0 0
        %1362 = vmatpush2.bf16.msra.mxu0 0
        %1363 = vmatprep.mubr.bf16.mxu0 0
        %1364 = vmatmul.mubr.bf16.gmra.mxu0 %v1265
        %v1365 = vpop.f32.mrf.mxu0
        %v1366 = vadd.f32 0.0, %v1365
        %v1367 = vpop.f32.mrf.mxu0
        %v1368 = vpop.f32.mrf.mxu0
        %v1369 = vpop.f32.mrf.mxu0
        %1370 = vdwg.mxu0
        %v1371 = vadd.f32 %v1215, %v1366
        %v1372 = vld [vmem:[%s6] sm:$0x1]
        %v1374 = vlaneseq
        %v1375 = vshrl.u32 %v1374, 7
        %v1376 = vsub.s32 0, %v1375
        %v1377 = vrot.slane %v1372, %v1376
        %v1379 = vadd.f32 %v1371, %v1377
        %vm1380 = vcmp.gt.f32.partialorder %v1379, 0.0
        %v1381 = vmul.f32 %v1379, 0.2
        %v1382 = vsel %vm1380, %v1379, %v1381
        %s1383 = scalar_lea.vmem %s6, 1
        %v1384 = vld [vmem:[%s1383] sm:$0x1]
        %v1386 = vlaneseq
        %v1387 = vshrl.u32 %v1386, 7
        %v1388 = vsub.s32 0, %v1387
        %v1389 = vrot.slane %v1384, %v1388
        %v1391 = vadd.f32 %v1382, %v1389
        %v1392 = vpack.c.bf16 %v1391, %v1391
        %v1393 = vld [vmem:[%s7] sm:$0x1]
        %vm1394 = vcmask 31744
        %v1396 = vsel %vm1394, %v1393, 0
        %vm1398 = vcmask 1041408
        %v1400 = vsel %vm1398, %v1392, 0
        %1402 = vmatprep.subr.bf16.mxu0 0
        %1403 = vmatpush1.bf16.msra.mxu0 0
        %1404 = vmatprep.subr.bf16.mxu0 0
        %1405 = vmatpush1.bf16.msra.mxu0 0
        %1406 = vmatprep.subr.bf16.mxu0 0
        %1407 = vmatpush1.bf16.msra.mxu0 0
        %1408 = vmatprep.subr.bf16.mxu0 0
        %1409 = vmatpush1.bf16.msra.mxu0 0
        %1410 = vmatprep.subr.bf16.mxu0 0
        %1411 = vmatpush1.bf16.msra.mxu0 0
        %1412 = vmatprep.subr.bf16.mxu0 0
        %1413 = vmatpush1.bf16.msra.mxu0 0
        %1414 = vmatprep.subr.bf16.mxu0 0
        %1415 = vmatpush1.bf16.msra.mxu0 0
        %1416 = vmatprep.subr.bf16.mxu0 0
        %1417 = vmatpush1.bf16.msra.mxu0 %v1400
        %1418 = vmatprep.subr.bf16.mxu0 0
        %1419 = vmatpush2.bf16.msra.mxu0 0
        %1420 = vmatprep.subr.bf16.mxu0 0
        %1421 = vmatpush2.bf16.msra.mxu0 0
        %1422 = vmatprep.subr.bf16.mxu0 0
        %1423 = vmatpush2.bf16.msra.mxu0 0
        %1424 = vmatprep.subr.bf16.mxu0 0
        %1425 = vmatpush2.bf16.msra.mxu0 0
        %1426 = vmatprep.subr.bf16.mxu0 0
        %1427 = vmatpush2.bf16.msra.mxu0 0
        %1428 = vmatprep.subr.bf16.mxu0 0
        %1429 = vmatpush2.bf16.msra.mxu0 0
        %1430 = vmatprep.subr.bf16.mxu0 0
        %1431 = vmatpush2.bf16.msra.mxu0 0
        %1432 = vmatprep.subr.bf16.mxu0 0
        %1433 = vmatpush2.bf16.msra.mxu0 0
        %1434 = vmatprep.mubr.bf16.mxu0 0
        %1435 = vmatmul.mubr.bf16.gmra.mxu0 %v1396
        %v1436 = vpop.f32.mrf.mxu0
        %v1437 = vadd.f32 0.0, %v1436
        %v1438 = vpop.f32.mrf.mxu0
        %v1439 = vpop.f32.mrf.mxu0
        %v1440 = vpop.f32.mrf.mxu0
        %1441 = vdwg.mxu0
        %v1442 = vpack.c.bf16 %v1437, %v1437
        %v1443 = vld [vmem:[%s8] sm:$0xf]
        %v1444 = vld [vmem:[%s8 + $0x4] sm:$0xf]
        %v1445 = vld [vmem:[%s8 + $0x8] sm:$0xf]
        %v1446 = vld [vmem:[%s8 + $0xc] sm:$0xf]
        %v1447 = vld [vmem:[%s8 + $0x10] sm:$0xf]
        %v1448 = vld [vmem:[%s8 + $0x14] sm:$0xf]
        %v1449 = vld [vmem:[%s8 + $0x18] sm:$0xf]
        %v1450 = vld [vmem:[%s8 + $0x1c] sm:$0xf]
        %v1451 = vld [vmem:[%s8 + $0x20] sm:$0xf]
        %v1452 = vld [vmem:[%s8 + $0x24] sm:$0xf]
        %v1453 = vld [vmem:[%s8 + $0x28] sm:$0xf]
        %v1454 = vld [vmem:[%s8 + $0x2c] sm:$0xf]
        %v1455 = vld [vmem:[%s8 + $0x30] sm:$0xf]
        %v1456 = vld [vmem:[%s8 + $0x34] sm:$0xf]
        %v1457 = vld [vmem:[%s8 + $0x38] sm:$0xf]
        %v1458 = vld [vmem:[%s8 + $0x3c] sm:$0xf]
        %s1459 = scalar_lea.vmem %s7, 1
        %v1460 = vld [vmem:[%s1459] sm:$0x1]
        %v1462 = vsel %vm1394, %v1460, 0
        %1464 = vmatprep.subr.bf16.mxu0 0
        %1465 = vmatpush1.bf16.msra.mxu0 0
        %1466 = vmatprep.subr.bf16.mxu0 0
        %1467 = vmatpush1.bf16.msra.mxu0 0
        %1468 = vmatprep.subr.bf16.mxu0 0
        %1469 = vmatpush1.bf16.msra.mxu0 0
        %1470 = vmatprep.subr.bf16.mxu0 0
        %1471 = vmatpush1.bf16.msra.mxu0 0
        %1472 = vmatprep.subr.bf16.mxu0 0
        %1473 = vmatpush1.bf16.msra.mxu0 0
        %1474 = vmatprep.subr.bf16.mxu0 0
        %1475 = vmatpush1.bf16.msra.mxu0 0
        %1476 = vmatprep.subr.bf16.mxu0 0
        %1477 = vmatpush1.bf16.msra.mxu0 0
        %1478 = vmatprep.subr.bf16.mxu0 0
        %1479 = vmatpush1.bf16.msra.mxu0 %v1400
        %1480 = vmatprep.subr.bf16.mxu0 0
        %1481 = vmatpush2.bf16.msra.mxu0 0
        %1482 = vmatprep.subr.bf16.mxu0 0
        %1483 = vmatpush2.bf16.msra.mxu0 0
        %1484 = vmatprep.subr.bf16.mxu0 0
        %1485 = vmatpush2.bf16.msra.mxu0 0
        %1486 = vmatprep.subr.bf16.mxu0 0
        %1487 = vmatpush2.bf16.msra.mxu0 0
        %1488 = vmatprep.subr.bf16.mxu0 0
        %1489 = vmatpush2.bf16.msra.mxu0 0
        %1490 = vmatprep.subr.bf16.mxu0 0
        %1491 = vmatpush2.bf16.msra.mxu0 0
        %1492 = vmatprep.subr.bf16.mxu0 0
        %1493 = vmatpush2.bf16.msra.mxu0 0
        %1494 = vmatprep.subr.bf16.mxu0 0
        %1495 = vmatpush2.bf16.msra.mxu0 0
        %1496 = vmatprep.mubr.bf16.mxu0 0
        %1497 = vmatmul.mubr.bf16.gmra.mxu0 %v1462
        %v1498 = vpop.f32.mrf.mxu0
        %v1499 = vadd.f32 0.0, %v1498
        %v1500 = vpop.f32.mrf.mxu0
        %v1501 = vpop.f32.mrf.mxu0
        %v1502 = vpop.f32.mrf.mxu0
        %1503 = vdwg.mxu0
        %v1504 = vpack.c.bf16 %v1499, %v1499
        %s1505 = scalar_lea.vmem %s8, 64
        %v1506 = vld [vmem:[%s1505] sm:$0xf]
        %v1507 = vld [vmem:[%s1505 + $0x4] sm:$0xf]
        %v1508 = vld [vmem:[%s1505 + $0x8] sm:$0xf]
        %v1509 = vld [vmem:[%s1505 + $0xc] sm:$0xf]
        %v1510 = vld [vmem:[%s1505 + $0x10] sm:$0xf]
        %v1511 = vld [vmem:[%s1505 + $0x14] sm:$0xf]
        %v1512 = vld [vmem:[%s1505 + $0x18] sm:$0xf]
        %v1513 = vld [vmem:[%s1505 + $0x1c] sm:$0xf]
        %v1514 = vld [vmem:[%s1505 + $0x20] sm:$0xf]
        %v1515 = vld [vmem:[%s1505 + $0x24] sm:$0xf]
        %v1516 = vld [vmem:[%s1505 + $0x28] sm:$0xf]
        %v1517 = vld [vmem:[%s1505 + $0x2c] sm:$0xf]
        %v1518 = vld [vmem:[%s1505 + $0x30] sm:$0xf]
        %v1519 = vld [vmem:[%s1505 + $0x34] sm:$0xf]
        %v1520 = vld [vmem:[%s1505 + $0x38] sm:$0xf]
        %v1521 = vld [vmem:[%s1505 + $0x3c] sm:$0xf]
        %v1538 = vunpack.c.l.b16 %v1506
        %v1539 = vunpack.c.l.b16 %v1507
        %v1540 = vunpack.c.l.b16 %v1508
        %v1541 = vunpack.c.l.b16 %v1509
        %v1542 = vunpack.c.l.b16 %v1510
        %v1543 = vunpack.c.l.b16 %v1511
        %v1544 = vunpack.c.l.b16 %v1512
        %v1545 = vunpack.c.l.b16 %v1513
        %v1546 = vunpack.c.l.b16 %v1514
        %v1547 = vunpack.c.l.b16 %v1515
        %v1548 = vunpack.c.l.b16 %v1516
        %v1549 = vunpack.c.l.b16 %v1517
        %v1550 = vunpack.c.l.b16 %v1518
        %v1551 = vunpack.c.l.b16 %v1519
        %v1552 = vunpack.c.l.b16 %v1520
        %v1553 = vunpack.c.l.b16 %v1521
        %v1554 = vpack.c.b16 %v1539, %v1538
        %v1555 = vpack.c.b16 %v1541, %v1540
        %v1556 = vpack.c.b16 %v1543, %v1542
        %v1557 = vpack.c.b16 %v1545, %v1544
        %v1558 = vpack.c.b16 %v1547, %v1546
        %v1559 = vpack.c.b16 %v1549, %v1548
        %v1560 = vpack.c.b16 %v1551, %v1550
        %v1561 = vpack.c.b16 %v1553, %v1552
        %1570 = vmatprep.subr.bf16.mxu0 0
        %1571 = vmatpush1.bf16.msra.mxu0 %v1561
        %1572 = vmatprep.subr.bf16.mxu0 0
        %1573 = vmatpush1.bf16.msra.mxu0 %v1560
        %1574 = vmatprep.subr.bf16.mxu0 0
        %1575 = vmatpush1.bf16.msra.mxu0 %v1559
        %1576 = vmatprep.subr.bf16.mxu0 0
        %1577 = vmatpush1.bf16.msra.mxu0 %v1558
        %1578 = vmatprep.subr.bf16.mxu0 0
        %1579 = vmatpush1.bf16.msra.mxu0 %v1557
        %1580 = vmatprep.subr.bf16.mxu0 0
        %1581 = vmatpush1.bf16.msra.mxu0 %v1556
        %1582 = vmatprep.subr.bf16.mxu0 0
        %1583 = vmatpush1.bf16.msra.mxu0 %v1555
        %1584 = vmatprep.subr.bf16.mxu0 0
        %1585 = vmatpush1.bf16.msra.mxu0 %v1554
        %1586 = vmatprep.subr.bf16.mxu0 0
        %1587 = vmatpush2.bf16.msra.mxu0 0
        %1588 = vmatprep.subr.bf16.mxu0 0
        %1589 = vmatpush2.bf16.msra.mxu0 0
        %1590 = vmatprep.subr.bf16.mxu0 0
        %1591 = vmatpush2.bf16.msra.mxu0 0
        %1592 = vmatprep.subr.bf16.mxu0 0
        %1593 = vmatpush2.bf16.msra.mxu0 0
        %1594 = vmatprep.subr.bf16.mxu0 0
        %1595 = vmatpush2.bf16.msra.mxu0 0
        %1596 = vmatprep.subr.bf16.mxu0 0
        %1597 = vmatpush2.bf16.msra.mxu0 0
        %1598 = vmatprep.subr.bf16.mxu0 0
        %1599 = vmatpush2.bf16.msra.mxu0 0
        %1600 = vmatprep.subr.bf16.mxu0 0
        %1601 = vmatpush2.bf16.msra.mxu0 0
        %1602 = vmatprep.mubr.bf16.mxu0 0
        %1603 = vmatmul.mubr.bf16.gmra.mxu0 %v1504
        %v1604 = vpop.f32.mrf.mxu0
        %v1605 = vadd.f32 0.0, %v1604
        %v1606 = vpop.f32.mrf.mxu0
        %v1607 = vpop.f32.mrf.mxu0
        %v1608 = vpop.f32.mrf.mxu0
        %1609 = vdwg.mxu0
        %v1626 = vunpack.c.l.b16 %v1443
        %v1627 = vunpack.c.l.b16 %v1444
        %v1628 = vunpack.c.l.b16 %v1445
        %v1629 = vunpack.c.l.b16 %v1446
        %v1630 = vunpack.c.l.b16 %v1447
        %v1631 = vunpack.c.l.b16 %v1448
        %v1632 = vunpack.c.l.b16 %v1449
        %v1633 = vunpack.c.l.b16 %v1450
        %v1634 = vunpack.c.l.b16 %v1451
        %v1635 = vunpack.c.l.b16 %v1452
        %v1636 = vunpack.c.l.b16 %v1453
        %v1637 = vunpack.c.l.b16 %v1454
        %v1638 = vunpack.c.l.b16 %v1455
        %v1639 = vunpack.c.l.b16 %v1456
        %v1640 = vunpack.c.l.b16 %v1457
        %v1641 = vunpack.c.l.b16 %v1458
        %v1642 = vpack.c.b16 %v1627, %v1626
        %v1643 = vpack.c.b16 %v1629, %v1628
        %v1644 = vpack.c.b16 %v1631, %v1630
        %v1645 = vpack.c.b16 %v1633, %v1632
        %v1646 = vpack.c.b16 %v1635, %v1634
        %v1647 = vpack.c.b16 %v1637, %v1636
        %v1648 = vpack.c.b16 %v1639, %v1638
        %v1649 = vpack.c.b16 %v1641, %v1640
        %1658 = vmatprep.subr.bf16.mxu0 0
        %1659 = vmatpush1.bf16.msra.mxu0 %v1649
        %1660 = vmatprep.subr.bf16.mxu0 0
        %1661 = vmatpush1.bf16.msra.mxu0 %v1648
        %1662 = vmatprep.subr.bf16.mxu0 0
        %1663 = vmatpush1.bf16.msra.mxu0 %v1647
        %1664 = vmatprep.subr.bf16.mxu0 0
        %1665 = vmatpush1.bf16.msra.mxu0 %v1646
        %1666 = vmatprep.subr.bf16.mxu0 0
        %1667 = vmatpush1.bf16.msra.mxu0 %v1645
        %1668 = vmatprep.subr.bf16.mxu0 0
        %1669 = vmatpush1.bf16.msra.mxu0 %v1644
        %1670 = vmatprep.subr.bf16.mxu0 0
        %1671 = vmatpush1.bf16.msra.mxu0 %v1643
        %1672 = vmatprep.subr.bf16.mxu0 0
        %1673 = vmatpush1.bf16.msra.mxu0 %v1642
        %1674 = vmatprep.subr.bf16.mxu0 0
        %1675 = vmatpush2.bf16.msra.mxu0 0
        %1676 = vmatprep.subr.bf16.mxu0 0
        %1677 = vmatpush2.bf16.msra.mxu0 0
        %1678 = vmatprep.subr.bf16.mxu0 0
        %1679 = vmatpush2.bf16.msra.mxu0 0
        %1680 = vmatprep.subr.bf16.mxu0 0
        %1681 = vmatpush2.bf16.msra.mxu0 0
        %1682 = vmatprep.subr.bf16.mxu0 0
        %1683 = vmatpush2.bf16.msra.mxu0 0
        %1684 = vmatprep.subr.bf16.mxu0 0
        %1685 = vmatpush2.bf16.msra.mxu0 0
        %1686 = vmatprep.subr.bf16.mxu0 0
        %1687 = vmatpush2.bf16.msra.mxu0 0
        %1688 = vmatprep.subr.bf16.mxu0 0
        %1689 = vmatpush2.bf16.msra.mxu0 0
        %1690 = vmatprep.mubr.bf16.mxu0 0
        %1691 = vmatmul.mubr.bf16.gmra.mxu0 %v1442
        %v1692 = vpop.f32.mrf.mxu0
        %v1693 = vadd.f32 %v1605, %v1692
        %v1694 = vpop.f32.mrf.mxu0
        %v1695 = vpop.f32.mrf.mxu0
        %v1696 = vpop.f32.mrf.mxu0
        %1697 = vdwg.mxu0
        %s1698 = scalar_lea.vmem %s7, 2
        %v1699 = vld [vmem:[%s1698] sm:$0x1]
        %v1701 = vsel %vm1394, %v1699, 0
        %1703 = vmatprep.subr.bf16.mxu0 0
        %1704 = vmatpush1.bf16.msra.mxu0 0
        %1705 = vmatprep.subr.bf16.mxu0 0
        %1706 = vmatpush1.bf16.msra.mxu0 0
        %1707 = vmatprep.subr.bf16.mxu0 0
        %1708 = vmatpush1.bf16.msra.mxu0 0
        %1709 = vmatprep.subr.bf16.mxu0 0
        %1710 = vmatpush1.bf16.msra.mxu0 0
        %1711 = vmatprep.subr.bf16.mxu0 0
        %1712 = vmatpush1.bf16.msra.mxu0 0
        %1713 = vmatprep.subr.bf16.mxu0 0
        %1714 = vmatpush1.bf16.msra.mxu0 0
        %1715 = vmatprep.subr.bf16.mxu0 0
        %1716 = vmatpush1.bf16.msra.mxu0 0
        %1717 = vmatprep.subr.bf16.mxu0 0
        %1718 = vmatpush1.bf16.msra.mxu0 %v1400
        %1719 = vmatprep.subr.bf16.mxu0 0
        %1720 = vmatpush2.bf16.msra.mxu0 0
        %1721 = vmatprep.subr.bf16.mxu0 0
        %1722 = vmatpush2.bf16.msra.mxu0 0
        %1723 = vmatprep.subr.bf16.mxu0 0
        %1724 = vmatpush2.bf16.msra.mxu0 0
        %1725 = vmatprep.subr.bf16.mxu0 0
        %1726 = vmatpush2.bf16.msra.mxu0 0
        %1727 = vmatprep.subr.bf16.mxu0 0
        %1728 = vmatpush2.bf16.msra.mxu0 0
        %1729 = vmatprep.subr.bf16.mxu0 0
        %1730 = vmatpush2.bf16.msra.mxu0 0
        %1731 = vmatprep.subr.bf16.mxu0 0
        %1732 = vmatpush2.bf16.msra.mxu0 0
        %1733 = vmatprep.subr.bf16.mxu0 0
        %1734 = vmatpush2.bf16.msra.mxu0 0
        %1735 = vmatprep.mubr.bf16.mxu0 0
        %1736 = vmatmul.mubr.bf16.gmra.mxu0 %v1701
        %v1737 = vpop.f32.mrf.mxu0
        %v1738 = vadd.f32 0.0, %v1737
        %v1739 = vpop.f32.mrf.mxu0
        %v1740 = vpop.f32.mrf.mxu0
        %v1741 = vpop.f32.mrf.mxu0
        %1742 = vdwg.mxu0
        %v1743 = vpack.c.bf16 %v1738, %v1738
        %s1744 = scalar_lea.vmem %s8, 128
        %v1745 = vld [vmem:[%s1744] sm:$0xf]
        %v1746 = vld [vmem:[%s1744 + $0x4] sm:$0xf]
        %v1747 = vld [vmem:[%s1744 + $0x8] sm:$0xf]
        %v1748 = vld [vmem:[%s1744 + $0xc] sm:$0xf]
        %v1749 = vld [vmem:[%s1744 + $0x10] sm:$0xf]
        %v1750 = vld [vmem:[%s1744 + $0x14] sm:$0xf]
        %v1751 = vld [vmem:[%s1744 + $0x18] sm:$0xf]
        %v1752 = vld [vmem:[%s1744 + $0x1c] sm:$0xf]
        %v1753 = vld [vmem:[%s1744 + $0x20] sm:$0xf]
        %v1754 = vld [vmem:[%s1744 + $0x24] sm:$0xf]
        %v1755 = vld [vmem:[%s1744 + $0x28] sm:$0xf]
        %v1756 = vld [vmem:[%s1744 + $0x2c] sm:$0xf]
        %v1757 = vld [vmem:[%s1744 + $0x30] sm:$0xf]
        %v1758 = vld [vmem:[%s1744 + $0x34] sm:$0xf]
        %v1759 = vld [vmem:[%s1744 + $0x38] sm:$0xf]
        %v1760 = vld [vmem:[%s1744 + $0x3c] sm:$0xf]
        %v1777 = vunpack.c.l.b16 %v1745
        %v1778 = vunpack.c.l.b16 %v1746
        %v1779 = vunpack.c.l.b16 %v1747
        %v1780 = vunpack.c.l.b16 %v1748
        %v1781 = vunpack.c.l.b16 %v1749
        %v1782 = vunpack.c.l.b16 %v1750
        %v1783 = vunpack.c.l.b16 %v1751
        %v1784 = vunpack.c.l.b16 %v1752
        %v1785 = vunpack.c.l.b16 %v1753
        %v1786 = vunpack.c.l.b16 %v1754
        %v1787 = vunpack.c.l.b16 %v1755
        %v1788 = vunpack.c.l.b16 %v1756
        %v1789 = vunpack.c.l.b16 %v1757
        %v1790 = vunpack.c.l.b16 %v1758
        %v1791 = vunpack.c.l.b16 %v1759
        %v1792 = vunpack.c.l.b16 %v1760
        %v1793 = vpack.c.b16 %v1778, %v1777
        %v1794 = vpack.c.b16 %v1780, %v1779
        %v1795 = vpack.c.b16 %v1782, %v1781
        %v1796 = vpack.c.b16 %v1784, %v1783
        %v1797 = vpack.c.b16 %v1786, %v1785
        %v1798 = vpack.c.b16 %v1788, %v1787
        %v1799 = vpack.c.b16 %v1790, %v1789
        %v1800 = vpack.c.b16 %v1792, %v1791
        %1809 = vmatprep.subr.bf16.mxu0 0
        %1810 = vmatpush1.bf16.msra.mxu0 %v1800
        %1811 = vmatprep.subr.bf16.mxu0 0
        %1812 = vmatpush1.bf16.msra.mxu0 %v1799
        %1813 = vmatprep.subr.bf16.mxu0 0
        %1814 = vmatpush1.bf16.msra.mxu0 %v1798
        %1815 = vmatprep.subr.bf16.mxu0 0
        %1816 = vmatpush1.bf16.msra.mxu0 %v1797
        %1817 = vmatprep.subr.bf16.mxu0 0
        %1818 = vmatpush1.bf16.msra.mxu0 %v1796
        %1819 = vmatprep.subr.bf16.mxu0 0
        %1820 = vmatpush1.bf16.msra.mxu0 %v1795
        %1821 = vmatprep.subr.bf16.mxu0 0
        %1822 = vmatpush1.bf16.msra.mxu0 %v1794
        %1823 = vmatprep.subr.bf16.mxu0 0
        %1824 = vmatpush1.bf16.msra.mxu0 %v1793
        %1825 = vmatprep.subr.bf16.mxu0 0
        %1826 = vmatpush2.bf16.msra.mxu0 0
        %1827 = vmatprep.subr.bf16.mxu0 0
        %1828 = vmatpush2.bf16.msra.mxu0 0
        %1829 = vmatprep.subr.bf16.mxu0 0
        %1830 = vmatpush2.bf16.msra.mxu0 0
        %1831 = vmatprep.subr.bf16.mxu0 0
        %1832 = vmatpush2.bf16.msra.mxu0 0
        %1833 = vmatprep.subr.bf16.mxu0 0
        %1834 = vmatpush2.bf16.msra.mxu0 0
        %1835 = vmatprep.subr.bf16.mxu0 0
        %1836 = vmatpush2.bf16.msra.mxu0 0
        %1837 = vmatprep.subr.bf16.mxu0 0
        %1838 = vmatpush2.bf16.msra.mxu0 0
        %1839 = vmatprep.subr.bf16.mxu0 0
        %1840 = vmatpush2.bf16.msra.mxu0 0
        %1841 = vmatprep.mubr.bf16.mxu0 0
        %1842 = vmatmul.mubr.bf16.gmra.mxu0 %v1743
        %v1843 = vpop.f32.mrf.mxu0
        %v1844 = vadd.f32 0.0, %v1843
        %v1845 = vpop.f32.mrf.mxu0
        %v1846 = vpop.f32.mrf.mxu0
        %v1847 = vpop.f32.mrf.mxu0
        %1848 = vdwg.mxu0
        %v1849 = vadd.f32 %v1693, %v1844
        %v1850 = vld [vmem:[%s9] sm:$0x1]
        %v1852 = vlaneseq
        %v1853 = vshrl.u32 %v1852, 7
        %v1854 = vsub.s32 0, %v1853
        %v1855 = vrot.slane %v1850, %v1854
        %v1857 = vadd.f32 %v1849, %v1855
        %vm1858 = vcmp.gt.f32.partialorder %v1857, 0.0
        %v1859 = vmul.f32 %v1857, 0.2
        %v1860 = vsel %vm1858, %v1857, %v1859
        %s1861 = scalar_lea.vmem %s9, 1
        %v1862 = vld [vmem:[%s1861] sm:$0x1]
        %v1864 = vlaneseq
        %v1865 = vshrl.u32 %v1864, 7
        %v1866 = vsub.s32 0, %v1865
        %v1867 = vrot.slane %v1862, %v1866
        %v1869 = vadd.f32 %v1860, %v1867
        %v1870 = vpack.c.bf16 %v1869, %v1869
        %v1871 = vld [vmem:[%s10] sm:$0x1]
        %vm1872 = vcmask 15360
        %v1874 = vsel %vm1872, %v1871, 0
        %vm1876 = vcmask 1040384
        %v1878 = vsel %vm1876, %v1870, 0
        %1880 = vmatprep.subr.bf16.mxu0 0
        %1881 = vmatpush1.bf16.msra.mxu0 0
        %1882 = vmatprep.subr.bf16.mxu0 0
        %1883 = vmatpush1.bf16.msra.mxu0 0
        %1884 = vmatprep.subr.bf16.mxu0 0
        %1885 = vmatpush1.bf16.msra.mxu0 0
        %1886 = vmatprep.subr.bf16.mxu0 0
        %1887 = vmatpush1.bf16.msra.mxu0 0
        %1888 = vmatprep.subr.bf16.mxu0 0
        %1889 = vmatpush1.bf16.msra.mxu0 0
        %1890 = vmatprep.subr.bf16.mxu0 0
        %1891 = vmatpush1.bf16.msra.mxu0 0
        %1892 = vmatprep.subr.bf16.mxu0 0
        %1893 = vmatpush1.bf16.msra.mxu0 0
        %1894 = vmatprep.subr.bf16.mxu0 0
        %1895 = vmatpush1.bf16.msra.mxu0 %v1878
        %1896 = vmatprep.subr.bf16.mxu0 0
        %1897 = vmatpush2.bf16.msra.mxu0 0
        %1898 = vmatprep.subr.bf16.mxu0 0
        %1899 = vmatpush2.bf16.msra.mxu0 0
        %1900 = vmatprep.subr.bf16.mxu0 0
        %1901 = vmatpush2.bf16.msra.mxu0 0
        %1902 = vmatprep.subr.bf16.mxu0 0
        %1903 = vmatpush2.bf16.msra.mxu0 0
        %1904 = vmatprep.subr.bf16.mxu0 0
        %1905 = vmatpush2.bf16.msra.mxu0 0
        %1906 = vmatprep.subr.bf16.mxu0 0
        %1907 = vmatpush2.bf16.msra.mxu0 0
        %1908 = vmatprep.subr.bf16.mxu0 0
        %1909 = vmatpush2.bf16.msra.mxu0 0
        %1910 = vmatprep.subr.bf16.mxu0 0
        %1911 = vmatpush2.bf16.msra.mxu0 0
        %1912 = vmatprep.mubr.bf16.mxu0 0
        %1913 = vmatmul.mubr.bf16.gmra.mxu0 %v1874
        %v1914 = vpop.f32.mrf.mxu0
        %v1915 = vadd.f32 0.0, %v1914
        %v1916 = vpop.f32.mrf.mxu0
        %v1917 = vpop.f32.mrf.mxu0
        %v1918 = vpop.f32.mrf.mxu0
        %1919 = vdwg.mxu0
        %v1920 = vpack.c.bf16 %v1915, %v1915
        %v1921 = vld [vmem:[#allocation5] sm:$0xf]
        %v1922 = vld [vmem:[#allocation5 + $0x4] sm:$0xf]
        %v1923 = vld [vmem:[#allocation5 + $0x8] sm:$0xf]
        %v1924 = vld [vmem:[#allocation5 + $0xc] sm:$0xf]
        %v1925 = vld [vmem:[#allocation5 + $0x10] sm:$0xf]
        %v1926 = vld [vmem:[#allocation5 + $0x14] sm:$0xf]
        %v1927 = vld [vmem:[#allocation5 + $0x18] sm:$0xf]
        %v1928 = vld [vmem:[#allocation5 + $0x1c] sm:$0xf]
        %v1929 = vld [vmem:[#allocation5 + $0x20] sm:$0xf]
        %v1930 = vld [vmem:[#allocation5 + $0x24] sm:$0xf]
        %v1931 = vld [vmem:[#allocation5 + $0x28] sm:$0xf]
        %v1932 = vld [vmem:[#allocation5 + $0x2c] sm:$0xf]
        %v1933 = vld [vmem:[#allocation5 + $0x30] sm:$0xf]
        %v1934 = vld [vmem:[#allocation5 + $0x34] sm:$0xf]
        %v1935 = vld [vmem:[#allocation5 + $0x38] sm:$0xf]
        %v1936 = vld [vmem:[#allocation5 + $0x3c] sm:$0xf]
        %s1937 = scalar_lea.vmem %s10, 1
        %v1938 = vld [vmem:[%s1937] sm:$0x1]
        %v1940 = vsel %vm1872, %v1938, 0
        %1942 = vmatprep.subr.bf16.mxu0 0
        %1943 = vmatpush1.bf16.msra.mxu0 0
        %1944 = vmatprep.subr.bf16.mxu0 0
        %1945 = vmatpush1.bf16.msra.mxu0 0
        %1946 = vmatprep.subr.bf16.mxu0 0
        %1947 = vmatpush1.bf16.msra.mxu0 0
        %1948 = vmatprep.subr.bf16.mxu0 0
        %1949 = vmatpush1.bf16.msra.mxu0 0
        %1950 = vmatprep.subr.bf16.mxu0 0
        %1951 = vmatpush1.bf16.msra.mxu0 0
        %1952 = vmatprep.subr.bf16.mxu0 0
        %1953 = vmatpush1.bf16.msra.mxu0 0
        %1954 = vmatprep.subr.bf16.mxu0 0
        %1955 = vmatpush1.bf16.msra.mxu0 0
        %1956 = vmatprep.subr.bf16.mxu0 0
        %1957 = vmatpush1.bf16.msra.mxu0 %v1878
        %1958 = vmatprep.subr.bf16.mxu0 0
        %1959 = vmatpush2.bf16.msra.mxu0 0
        %1960 = vmatprep.subr.bf16.mxu0 0
        %1961 = vmatpush2.bf16.msra.mxu0 0
        %1962 = vmatprep.subr.bf16.mxu0 0
        %1963 = vmatpush2.bf16.msra.mxu0 0
        %1964 = vmatprep.subr.bf16.mxu0 0
        %1965 = vmatpush2.bf16.msra.mxu0 0
        %1966 = vmatprep.subr.bf16.mxu0 0
        %1967 = vmatpush2.bf16.msra.mxu0 0
        %1968 = vmatprep.subr.bf16.mxu0 0
        %1969 = vmatpush2.bf16.msra.mxu0 0
        %1970 = vmatprep.subr.bf16.mxu0 0
        %1971 = vmatpush2.bf16.msra.mxu0 0
        %1972 = vmatprep.subr.bf16.mxu0 0
        %1973 = vmatpush2.bf16.msra.mxu0 0
        %1974 = vmatprep.mubr.bf16.mxu0 0
        %1975 = vmatmul.mubr.bf16.gmra.mxu0 %v1940
        %v1976 = vpop.f32.mrf.mxu0
        %v1977 = vadd.f32 0.0, %v1976
        %v1978 = vpop.f32.mrf.mxu0
        %v1979 = vpop.f32.mrf.mxu0
        %v1980 = vpop.f32.mrf.mxu0
        %1981 = vdwg.mxu0
        %v1982 = vpack.c.bf16 %v1977, %v1977
        %s1983 = scalar_lea.vmem [#allocation5], 64
        %v1984 = vld [vmem:[%s1983] sm:$0xf]
        %v1985 = vld [vmem:[%s1983 + $0x4] sm:$0xf]
        %v1986 = vld [vmem:[%s1983 + $0x8] sm:$0xf]
        %v1987 = vld [vmem:[%s1983 + $0xc] sm:$0xf]
        %v1988 = vld [vmem:[%s1983 + $0x10] sm:$0xf]
        %v1989 = vld [vmem:[%s1983 + $0x14] sm:$0xf]
        %v1990 = vld [vmem:[%s1983 + $0x18] sm:$0xf]
        %v1991 = vld [vmem:[%s1983 + $0x1c] sm:$0xf]
        %v1992 = vld [vmem:[%s1983 + $0x20] sm:$0xf]
        %v1993 = vld [vmem:[%s1983 + $0x24] sm:$0xf]
        %v1994 = vld [vmem:[%s1983 + $0x28] sm:$0xf]
        %v1995 = vld [vmem:[%s1983 + $0x2c] sm:$0xf]
        %v1996 = vld [vmem:[%s1983 + $0x30] sm:$0xf]
        %v1997 = vld [vmem:[%s1983 + $0x34] sm:$0xf]
        %v1998 = vld [vmem:[%s1983 + $0x38] sm:$0xf]
        %v1999 = vld [vmem:[%s1983 + $0x3c] sm:$0xf]
        %v2016 = vunpack.c.l.b16 %v1984
        %v2017 = vunpack.c.l.b16 %v1985
        %v2018 = vunpack.c.l.b16 %v1986
        %v2019 = vunpack.c.l.b16 %v1987
        %v2020 = vunpack.c.l.b16 %v1988
        %v2021 = vunpack.c.l.b16 %v1989
        %v2022 = vunpack.c.l.b16 %v1990
        %v2023 = vunpack.c.l.b16 %v1991
        %v2024 = vunpack.c.l.b16 %v1992
        %v2025 = vunpack.c.l.b16 %v1993
        %v2026 = vunpack.c.l.b16 %v1994
        %v2027 = vunpack.c.l.b16 %v1995
        %v2028 = vunpack.c.l.b16 %v1996
        %v2029 = vunpack.c.l.b16 %v1997
        %v2030 = vunpack.c.l.b16 %v1998
        %v2031 = vunpack.c.l.b16 %v1999
        %v2032 = vpack.c.b16 %v2017, %v2016
        %v2033 = vpack.c.b16 %v2019, %v2018
        %v2034 = vpack.c.b16 %v2021, %v2020
        %v2035 = vpack.c.b16 %v2023, %v2022
        %v2036 = vpack.c.b16 %v2025, %v2024
        %v2037 = vpack.c.b16 %v2027, %v2026
        %v2038 = vpack.c.b16 %v2029, %v2028
        %v2039 = vpack.c.b16 %v2031, %v2030
        %2048 = vmatprep.subr.bf16.mxu0 0
        %2049 = vmatpush1.bf16.msra.mxu0 %v2039
        %2050 = vmatprep.subr.bf16.mxu0 0
        %2051 = vmatpush1.bf16.msra.mxu0 %v2038
        %2052 = vmatprep.subr.bf16.mxu0 0
        %2053 = vmatpush1.bf16.msra.mxu0 %v2037
        %2054 = vmatprep.subr.bf16.mxu0 0
        %2055 = vmatpush1.bf16.msra.mxu0 %v2036
        %2056 = vmatprep.subr.bf16.mxu0 0
        %2057 = vmatpush1.bf16.msra.mxu0 %v2035
        %2058 = vmatprep.subr.bf16.mxu0 0
        %2059 = vmatpush1.bf16.msra.mxu0 %v2034
        %2060 = vmatprep.subr.bf16.mxu0 0
        %2061 = vmatpush1.bf16.msra.mxu0 %v2033
        %2062 = vmatprep.subr.bf16.mxu0 0
        %2063 = vmatpush1.bf16.msra.mxu0 %v2032
        %2064 = vmatprep.subr.bf16.mxu0 0
        %2065 = vmatpush2.bf16.msra.mxu0 0
        %2066 = vmatprep.subr.bf16.mxu0 0
        %2067 = vmatpush2.bf16.msra.mxu0 0
        %2068 = vmatprep.subr.bf16.mxu0 0
        %2069 = vmatpush2.bf16.msra.mxu0 0
        %2070 = vmatprep.subr.bf16.mxu0 0
        %2071 = vmatpush2.bf16.msra.mxu0 0
        %2072 = vmatprep.subr.bf16.mxu0 0
        %2073 = vmatpush2.bf16.msra.mxu0 0
        %2074 = vmatprep.subr.bf16.mxu0 0
        %2075 = vmatpush2.bf16.msra.mxu0 0
        %2076 = vmatprep.subr.bf16.mxu0 0
        %2077 = vmatpush2.bf16.msra.mxu0 0
        %2078 = vmatprep.subr.bf16.mxu0 0
        %2079 = vmatpush2.bf16.msra.mxu0 0
        %2080 = vmatprep.mubr.bf16.mxu0 0
        %2081 = vmatmul.mubr.bf16.gmra.mxu0 %v1982
        %v2082 = vpop.f32.mrf.mxu0
        %v2083 = vadd.f32 0.0, %v2082
        %v2084 = vpop.f32.mrf.mxu0
        %v2085 = vpop.f32.mrf.mxu0
        %v2086 = vpop.f32.mrf.mxu0
        %2087 = vdwg.mxu0
        %v2104 = vunpack.c.l.b16 %v1921
        %v2105 = vunpack.c.l.b16 %v1922
        %v2106 = vunpack.c.l.b16 %v1923
        %v2107 = vunpack.c.l.b16 %v1924
        %v2108 = vunpack.c.l.b16 %v1925
        %v2109 = vunpack.c.l.b16 %v1926
        %v2110 = vunpack.c.l.b16 %v1927
        %v2111 = vunpack.c.l.b16 %v1928
        %v2112 = vunpack.c.l.b16 %v1929
        %v2113 = vunpack.c.l.b16 %v1930
        %v2114 = vunpack.c.l.b16 %v1931
        %v2115 = vunpack.c.l.b16 %v1932
        %v2116 = vunpack.c.l.b16 %v1933
        %v2117 = vunpack.c.l.b16 %v1934
        %v2118 = vunpack.c.l.b16 %v1935
        %v2119 = vunpack.c.l.b16 %v1936
        %v2120 = vpack.c.b16 %v2105, %v2104
        %v2121 = vpack.c.b16 %v2107, %v2106
        %v2122 = vpack.c.b16 %v2109, %v2108
        %v2123 = vpack.c.b16 %v2111, %v2110
        %v2124 = vpack.c.b16 %v2113, %v2112
        %v2125 = vpack.c.b16 %v2115, %v2114
        %v2126 = vpack.c.b16 %v2117, %v2116
        %v2127 = vpack.c.b16 %v2119, %v2118
        %2136 = vmatprep.subr.bf16.mxu0 0
        %2137 = vmatpush1.bf16.msra.mxu0 %v2127
        %2138 = vmatprep.subr.bf16.mxu0 0
        %2139 = vmatpush1.bf16.msra.mxu0 %v2126
        %2140 = vmatprep.subr.bf16.mxu0 0
        %2141 = vmatpush1.bf16.msra.mxu0 %v2125
        %2142 = vmatprep.subr.bf16.mxu0 0
        %2143 = vmatpush1.bf16.msra.mxu0 %v2124
        %2144 = vmatprep.subr.bf16.mxu0 0
        %2145 = vmatpush1.bf16.msra.mxu0 %v2123
        %2146 = vmatprep.subr.bf16.mxu0 0
        %2147 = vmatpush1.bf16.msra.mxu0 %v2122
        %2148 = vmatprep.subr.bf16.mxu0 0
        %2149 = vmatpush1.bf16.msra.mxu0 %v2121
        %2150 = vmatprep.subr.bf16.mxu0 0
        %2151 = vmatpush1.bf16.msra.mxu0 %v2120
        %2152 = vmatprep.subr.bf16.mxu0 0
        %2153 = vmatpush2.bf16.msra.mxu0 0
        %2154 = vmatprep.subr.bf16.mxu0 0
        %2155 = vmatpush2.bf16.msra.mxu0 0
        %2156 = vmatprep.subr.bf16.mxu0 0
        %2157 = vmatpush2.bf16.msra.mxu0 0
        %2158 = vmatprep.subr.bf16.mxu0 0
        %2159 = vmatpush2.bf16.msra.mxu0 0
        %2160 = vmatprep.subr.bf16.mxu0 0
        %2161 = vmatpush2.bf16.msra.mxu0 0
        %2162 = vmatprep.subr.bf16.mxu0 0
        %2163 = vmatpush2.bf16.msra.mxu0 0
        %2164 = vmatprep.subr.bf16.mxu0 0
        %2165 = vmatpush2.bf16.msra.mxu0 0
        %2166 = vmatprep.subr.bf16.mxu0 0
        %2167 = vmatpush2.bf16.msra.mxu0 0
        %2168 = vmatprep.mubr.bf16.mxu0 0
        %2169 = vmatmul.mubr.bf16.gmra.mxu0 %v1920
        %v2170 = vpop.f32.mrf.mxu0
        %v2171 = vadd.f32 %v2083, %v2170
        %v2172 = vpop.f32.mrf.mxu0
        %v2173 = vpop.f32.mrf.mxu0
        %v2174 = vpop.f32.mrf.mxu0
        %2175 = vdwg.mxu0
        %s2176 = scalar_lea.vmem %s10, 2
        %v2177 = vld [vmem:[%s2176] sm:$0x1]
        %v2179 = vsel %vm1872, %v2177, 0
        %2181 = vmatprep.subr.bf16.mxu0 0
        %2182 = vmatpush1.bf16.msra.mxu0 0
        %2183 = vmatprep.subr.bf16.mxu0 0
        %2184 = vmatpush1.bf16.msra.mxu0 0
        %2185 = vmatprep.subr.bf16.mxu0 0
        %2186 = vmatpush1.bf16.msra.mxu0 0
        %2187 = vmatprep.subr.bf16.mxu0 0
        %2188 = vmatpush1.bf16.msra.mxu0 0
        %2189 = vmatprep.subr.bf16.mxu0 0
        %2190 = vmatpush1.bf16.msra.mxu0 0
        %2191 = vmatprep.subr.bf16.mxu0 0
        %2192 = vmatpush1.bf16.msra.mxu0 0
        %2193 = vmatprep.subr.bf16.mxu0 0
        %2194 = vmatpush1.bf16.msra.mxu0 0
        %2195 = vmatprep.subr.bf16.mxu0 0
        %2196 = vmatpush1.bf16.msra.mxu0 %v1878
        %2197 = vmatprep.subr.bf16.mxu0 0
        %2198 = vmatpush2.bf16.msra.mxu0 0
        %2199 = vmatprep.subr.bf16.mxu0 0
        %2200 = vmatpush2.bf16.msra.mxu0 0
        %2201 = vmatprep.subr.bf16.mxu0 0
        %2202 = vmatpush2.bf16.msra.mxu0 0
        %2203 = vmatprep.subr.bf16.mxu0 0
        %2204 = vmatpush2.bf16.msra.mxu0 0
        %2205 = vmatprep.subr.bf16.mxu0 0
        %2206 = vmatpush2.bf16.msra.mxu0 0
        %2207 = vmatprep.subr.bf16.mxu0 0
        %2208 = vmatpush2.bf16.msra.mxu0 0
        %2209 = vmatprep.subr.bf16.mxu0 0
        %2210 = vmatpush2.bf16.msra.mxu0 0
        %2211 = vmatprep.subr.bf16.mxu0 0
        %2212 = vmatpush2.bf16.msra.mxu0 0
        %2213 = vmatprep.mubr.bf16.mxu0 0
        %2214 = vmatmul.mubr.bf16.gmra.mxu0 %v2179
        %v2215 = vpop.f32.mrf.mxu0
        %v2216 = vadd.f32 0.0, %v2215
        %v2217 = vpop.f32.mrf.mxu0
        %v2218 = vpop.f32.mrf.mxu0
        %v2219 = vpop.f32.mrf.mxu0
        %2220 = vdwg.mxu0
        %v2221 = vpack.c.bf16 %v2216, %v2216
        %s2222 = scalar_lea.vmem [#allocation5], 128
        %v2223 = vld [vmem:[%s2222] sm:$0xf]
        %v2224 = vld [vmem:[%s2222 + $0x4] sm:$0xf]
        %v2225 = vld [vmem:[%s2222 + $0x8] sm:$0xf]
        %v2226 = vld [vmem:[%s2222 + $0xc] sm:$0xf]
        %v2227 = vld [vmem:[%s2222 + $0x10] sm:$0xf]
        %v2228 = vld [vmem:[%s2222 + $0x14] sm:$0xf]
        %v2229 = vld [vmem:[%s2222 + $0x18] sm:$0xf]
        %v2230 = vld [vmem:[%s2222 + $0x1c] sm:$0xf]
        %v2231 = vld [vmem:[%s2222 + $0x20] sm:$0xf]
        %v2232 = vld [vmem:[%s2222 + $0x24] sm:$0xf]
        %v2233 = vld [vmem:[%s2222 + $0x28] sm:$0xf]
        %v2234 = vld [vmem:[%s2222 + $0x2c] sm:$0xf]
        %v2235 = vld [vmem:[%s2222 + $0x30] sm:$0xf]
        %v2236 = vld [vmem:[%s2222 + $0x34] sm:$0xf]
        %v2237 = vld [vmem:[%s2222 + $0x38] sm:$0xf]
        %v2238 = vld [vmem:[%s2222 + $0x3c] sm:$0xf]
        %v2255 = vunpack.c.l.b16 %v2223
        %v2256 = vunpack.c.l.b16 %v2224
        %v2257 = vunpack.c.l.b16 %v2225
        %v2258 = vunpack.c.l.b16 %v2226
        %v2259 = vunpack.c.l.b16 %v2227
        %v2260 = vunpack.c.l.b16 %v2228
        %v2261 = vunpack.c.l.b16 %v2229
        %v2262 = vunpack.c.l.b16 %v2230
        %v2263 = vunpack.c.l.b16 %v2231
        %v2264 = vunpack.c.l.b16 %v2232
        %v2265 = vunpack.c.l.b16 %v2233
        %v2266 = vunpack.c.l.b16 %v2234
        %v2267 = vunpack.c.l.b16 %v2235
        %v2268 = vunpack.c.l.b16 %v2236
        %v2269 = vunpack.c.l.b16 %v2237
        %v2270 = vunpack.c.l.b16 %v2238
        %v2271 = vpack.c.b16 %v2256, %v2255
        %v2272 = vpack.c.b16 %v2258, %v2257
        %v2273 = vpack.c.b16 %v2260, %v2259
        %v2274 = vpack.c.b16 %v2262, %v2261
        %v2275 = vpack.c.b16 %v2264, %v2263
        %v2276 = vpack.c.b16 %v2266, %v2265
        %v2277 = vpack.c.b16 %v2268, %v2267
        %v2278 = vpack.c.b16 %v2270, %v2269
        %2287 = vmatprep.subr.bf16.mxu0 0
        %2288 = vmatpush1.bf16.msra.mxu0 %v2278
        %2289 = vmatprep.subr.bf16.mxu0 0
        %2290 = vmatpush1.bf16.msra.mxu0 %v2277
        %2291 = vmatprep.subr.bf16.mxu0 0
        %2292 = vmatpush1.bf16.msra.mxu0 %v2276
        %2293 = vmatprep.subr.bf16.mxu0 0
        %2294 = vmatpush1.bf16.msra.mxu0 %v2275
        %2295 = vmatprep.subr.bf16.mxu0 0
        %2296 = vmatpush1.bf16.msra.mxu0 %v2274
        %2297 = vmatprep.subr.bf16.mxu0 0
        %2298 = vmatpush1.bf16.msra.mxu0 %v2273
        %2299 = vmatprep.subr.bf16.mxu0 0
        %2300 = vmatpush1.bf16.msra.mxu0 %v2272
        %2301 = vmatprep.subr.bf16.mxu0 0
        %2302 = vmatpush1.bf16.msra.mxu0 %v2271
        %2303 = vmatprep.subr.bf16.mxu0 0
        %2304 = vmatpush2.bf16.msra.mxu0 0
        %2305 = vmatprep.subr.bf16.mxu0 0
        %2306 = vmatpush2.bf16.msra.mxu0 0
        %2307 = vmatprep.subr.bf16.mxu0 0
        %2308 = vmatpush2.bf16.msra.mxu0 0
        %2309 = vmatprep.subr.bf16.mxu0 0
        %2310 = vmatpush2.bf16.msra.mxu0 0
        %2311 = vmatprep.subr.bf16.mxu0 0
        %2312 = vmatpush2.bf16.msra.mxu0 0
        %2313 = vmatprep.subr.bf16.mxu0 0
        %2314 = vmatpush2.bf16.msra.mxu0 0
        %2315 = vmatprep.subr.bf16.mxu0 0
        %2316 = vmatpush2.bf16.msra.mxu0 0
        %2317 = vmatprep.subr.bf16.mxu0 0
        %2318 = vmatpush2.bf16.msra.mxu0 0
        %2319 = vmatprep.mubr.bf16.mxu0 0
        %2320 = vmatmul.mubr.bf16.gmra.mxu0 %v2221
        %v2321 = vpop.f32.mrf.mxu0
        %v2322 = vadd.f32 0.0, %v2321
        %v2323 = vpop.f32.mrf.mxu0
        %v2324 = vpop.f32.mrf.mxu0
        %v2325 = vpop.f32.mrf.mxu0
        %2326 = vdwg.mxu0
        %v2327 = vadd.f32 %v2171, %v2322
        %v2328 = vld [vmem:[%s12] sm:$0x1]
        %v2329 = vadd.f32 %v2327, %v2328
        %vm2330 = vcmp.gt.f32.partialorder %v2329, 0.0
        %v2331 = vmul.f32 %v2329, 0.2
        %v2332 = vsel %vm2330, %v2329, %v2331
        %s2333 = scalar_lea.vmem %s12, 1
        %v2334 = vld [vmem:[%s2333] sm:$0x1]
        %v2335 = vadd.f32 %v2332, %v2334
        %v2336 = vld [vmem:[%s13] sm:$0x1]
        %v2337 = vmul.f32 %v2335, %v2336
        %v2338 = vsel %vm1876, %v2337, 0.0
        %2339 = vadd.xlane.f32.xlu0 %v2338
        %v2340 = vpop.xlane.xlu0 %2339
        %v2341 = vadd.f32 %v2340, 0.0
        %v2342 = vld [vmem:[#allocation2] sm:$0x1]
        %v2343 = vadd.f32 %v2341, %v2342
        %v2344 = vmax.f32 %v2343, 0.0
        %v2345 = vand.u32 2147483647, %v2343
        %v2346 = vsub.f32 0.0, %v2345
        %v2347 = vmul.f32 %v2346, 1.442695
        %v2348 = vpow.pop %v2347
        %v2349 = vadd.f32 %v2348, 1.0
        %v2350 = vlog2.pop %v2349
        %v2351 = vmul.f32 %v2350, 0.6931472
        %v2352 = vadd.f32 %v2344, %v2351
        %2354 = vset.pattern.permute.xlu0 0
        %2355 = vperm.xlu0 %2354, %v2352
        %v2356 = vpop.permute.xlu0 %2355
        %v2358 = vadd.f32 %v2356, 0.0
        %2359 = vst [vmem:[%s522] sm:$0x1] %v2358
        %p2360 = scmp.lt.s32.totalorder %s30, 1
        %s2361 = scalar_select %p2360, %s30, 1
        %s2362 = scalar_lea.vmem %s15, %s2361
        // Predicated region
        $region89: #{_forward_impl.1} parent=79 // pred_check
          %p2363 = pneg %p368
        $region90: #{_forward_impl.1} parent=79 // pred_check_branch
          %2365 = sbr.rel (%p2363) target = $region92
        $region91: #{_forward_impl.1} parent=79 // pred_region
          _
        $region92: #{_forward_impl.1} parent=79 // pred_fallthru
          _
      $region80: #{_forward_impl.1} parent=5 // pred_fallthru
        _
      %p2366 = scmp.le.s32.totalorder 2, %s25
      // Predicated region
      $region93: #{_forward_impl.1} parent=5 // pred_check
        %p2367 = pneg %p2366
      $region94: #{_forward_impl.1} parent=5 // pred_check_branch
        %2369 = sbr.rel (%p2367) target = $region96
      $region95: #{_forward_impl.1} parent=5 // pred_region
        %s2370 = ssub.s32 %s25, 2
        // Predicated region
        $region97: #{_forward_impl.1} parent=95 // pred_check
          %p2371 = pneg %p374
        $region98: #{_forward_impl.1} parent=95 // pred_check_branch
          %2373 = sbr.rel (%p2371) target = $region100
        $region99: #{_forward_impl.1} parent=95 // pred_region
          %p2374 = scmp.lt.s32.totalorder %s31, 1
          %s2375 = scalar_select %p2374, %s31, 1
          %s2376 = scalar_lea.vmem %s15, %s2375
        $region100: #{_forward_impl.1} parent=95 // pred_fallthru
          _
      $region96: #{_forward_impl.1} parent=5 // pred_fallthru
        _
    $region6: #{_forward_impl.1} parent=1 // loop_footer
      %s29 = sadd.s32 1, %s25
    $region7: #{_forward_impl.1} parent=1 // loop_footer_branch
      %24 = sbr.rel target = $region3
    $region8: #{_forward_impl.1} parent=1 // loop_exit
      _
    %2377 = vsyncpa [#allocation4], 1
    %s2378 = scalar_lea.sflag [#allocation4], 1
    %2379 = vsyncpa %s2378, 1
    %2380 = vsyncpa [#allocation6], 1

</llo_original>
